<compile_context>
chip_gen: v7x
topology: tpu7x:2x2x1
jax: 0.10.0
libtpu: 0.0.40
codegen_flags: <defaults>
</compile_context>

<pallas_src>
import functools
import math

import jax
import jax.numpy as jnp
from jax.experimental import pallas as pl
from jax.experimental.pallas import tpu as pltpu

# ----------------------------- small synthetic config ------------------------
B = 2                       # batch
T = 16                      # input frames
NUM_MEL = 8                 # num_mel_bins
STACK = 4                   # encoder.embed.right_context + 1
STRIDE = 4                  # encoder.embed.subsampling_rate
TN = (T - STACK) // STRIDE + 1            # subsampled frames
INPUT_DIM = NUM_MEL * STACK               # stacked feature dim (F)
EMB_DIM = 16                # embedding_dim (E)
NUM_CODEBOOKS = 2           # num_codebooks (G)
NUM_EMB = 64                # num_embeddings per codebook (C)
ENC_DIM = 32                # encoder output size (D)
HIDDEN = 64                 # stand-in encoder hidden dim
MASK_LENGTH = 8
MIN_MASKS = 2
NORM_EPS = 1e-5
FEAT_REG_W = 0.01
N_ROWS = B * TN

ROW_TILE = 128              # lanes per grid step (multiple of 128)
# TODO(synk): at production shapes (mel=80, C up to 8192) budget ROW_TILE
#             against v7x's 64 MiB VMEM (the live [C, ROW_TILE] f32 score /
#             logit tile dominates) and raise vmem_limit_bytes via
#             pltpu.CompilerParams; at toy shapes the defaults are fine.


def _round_up(n, m):
    return ((n + m - 1) // m) * m


# ----------------------------- fused Pallas kernel ---------------------------
def _bestrq_fused_kernel(x_ref, mask_ref, mean_ref, istd_ref, memb_ref,
                         exp_ref, proj_ref, cb_ref, cbhsq_ref,
                         w1_ref, b1_ref, w2_ref, b2_ref, hw_ref, hb_ref,
                         codes_ref, nll_ref, pred_ref, *, G, C, E, eps):
    """Fused BEST-RQ hot path for one row tile (rows on lanes).

    Inputs (per tile unless marked const):
      x      [F, N]       raw stacked frames (F = stack*mel, N = ROW_TILE)
      mask   [STACK, N]   1.0 where the originating frame is span-masked
      mean   [F, 1] const CMVN mean tiled per stacked frame
      istd   [F, 1] const CMVN inverse std tiled
      memb   [F, 1] const mask embedding tiled
      exp    [F, STACK]   const 0/1 expander: exp @ mask -> per-feature mask
      proj   [G*E, F]     const projection^T (bf16)
      cb     [G*C, E]     const codebook, group-major rows (bf16)
      cbhsq  [G*C, 1]     const 0.5 * ||codebook||^2 (f32)
      w1/b1/w2/b2         const stand-in encoder MLP (W^T layouts, bf16/f32)
      hw     [G*C, D]     const head weights, row g*C+c = top_n_out[g, :, c]
      hb     [G*C, 1]     const head bias (f32)
    Outputs (lane-dense rows):
      codes  [G, N] int32   nearest-codebook ids (targets)
      nll    [G, N] f32     -log p(target | head logits)
      pred   [G, N] int32   argmax of head logits
    """
    f32 = jnp.float32
    bf16 = jnp.bfloat16

    # ---- CMVN (features on sublanes, rows on lanes) ----
    x = x_ref[...]
    xn = (x - mean_ref[...]) * istd_ref[...]                       # [F, N]

    # ---- BEST-RQ signal masking; expand [STACK, N] -> [F, N] with a tiny
    # 0/1 matmul instead of shipping a dense per-feature float mask ----
    m = jnp.dot(exp_ref[...], mask_ref[...],
                preferred_element_type=f32)                        # [F, N]
    xm = xn + m * (memb_ref[...] - xn)        # where(mask, mask_emb, xn)

    # ================= phase 1: target path (quantizer codes) ===============
    mu = jnp.mean(xn, axis=0, keepdims=True)
    var = jnp.mean(jnp.square(xn - mu), axis=0, keepdims=True)
    ln = (xn - mu) * jax.lax.rsqrt(var + eps)                      # [F, N]
    lat = jnp.dot(proj_ref[...], ln.astype(bf16),
                  preferred_element_type=f32)                      # [G*E, N]
    lat_b = lat.astype(bf16)
    for g in range(G):                          # G is tiny and static
        cross = jnp.dot(cb_ref[g * C:(g + 1) * C, :],
                        lat_b[g * E:(g + 1) * E, :],
                        preferred_element_type=f32)                # [C, N]
        # argmin_c ||lat - cb_c||^2 == argmax_c (lat.cb_c - 0.5*||cb_c||^2);
        # the ||lat||^2 term is constant per column.  Kept in f32 so bf16 MXU
        # operands cannot flip near-tied argmins more than necessary.
        negd = cross - cbhsq_ref[g * C:(g + 1) * C, :]             # [C, N]
        iota = jax.lax.broadcasted_iota(jnp.int32, negd.shape, 0)
        best = jnp.max(negd, axis=0, keepdims=True)
        codes_ref[g:g + 1, :] = jnp.min(
            jnp.where(negd >= best, iota, C - 1),
            axis=0, keepdims=True)                 # first argmax (= argmin)

    # ============ phase 2: encoder stand-in + fused per-codebook head =======
    # TODO(synk): the real wenet Conformer encoder is an external module; this
    # stacked-frames MLP on the masked signal is a stand-in.
    h = jnp.maximum(
        jnp.dot(w1_ref[...], xm.astype(bf16), preferred_element_type=f32)
        + b1_ref[...], 0.0)                                        # [H, N]
    enc = (jnp.dot(w2_ref[...], h.astype(bf16), preferred_element_type=f32)
           + b2_ref[...])                                          # [D, N]
    enc_b = enc.astype(bf16)
    for g in range(G):
        lg = (jnp.dot(hw_ref[g * C:(g + 1) * C, :], enc_b,
                      preferred_element_type=f32)
              + hb_ref[g * C:(g + 1) * C, :])                      # [C, N]
        iota = jax.lax.broadcasted_iota(jnp.int32, lg.shape, 0)
        codes_g = codes_ref[g:g + 1, :]          # reload this tile's targets
        lmax = jnp.max(lg, axis=0, keepdims=True)
        lse = lmax + jnp.log(jnp.sum(jnp.exp(lg - lmax),
                                     axis=0, keepdims=True))       # [1, N]
        sel = jnp.sum(jnp.where(iota == codes_g, lg, 0.0),
                      axis=0, keepdims=True)                       # [1, N]
        nll_ref[g:g + 1, :] = lse - sel
        pred_ref[g:g + 1, :] = jnp.min(
            jnp.where(lg >= lmax, iota, C - 1),
            axis=0, keepdims=True)                                 # first argmax


# ----------------------------- glue helpers ----------------------------------
def _make_span_mask(key, batch, length):
    # TODO(synk): simplified deterministic stand-in for compute_mask_indices_v2
    starts = jax.random.randint(key, (batch, MIN_MASKS), 0,
                                length - MASK_LENGTH + 1)
    pos = jnp.arange(length)[None, None, :]
    span = (pos >= starts[:, :, None]) & (pos < starts[:, :, None] + MASK_LENGTH)
    return jnp.any(span, axis=1)                        # [B, T] bool


# ----------------------------- forward ---------------------------------------
def bestrq_forward(xs, xs_lens, params, rng):
    k_mask, k_emb = jax.random.split(rng)
    mean = params['signal_mean']
    istd = params['signal_istd']
    G, C = NUM_CODEBOOKS, NUM_EMB

    # --- mask bookkeeping (cheap glue; signal masking itself is in-kernel) ---
    mask_bool = _make_span_mask(k_mask, B, T)
    pad_valid = jnp.arange(T)[None, :] < xs_lens[:, None]
    mask_bool = mask_bool & pad_valid
    mask_emb = 0.1 * jax.random.normal(k_emb, (NUM_MEL,), jnp.float32)

    # features_pen exactly as the reference: mean over the FULL CMVN'd input
    # (including padded frames), independent of frame stacking.
    features_pen = jnp.mean(jnp.square((xs - mean) * istd))

    # --- frame stacking (general stack/stride) on the RAW signal ---
    widx = jnp.arange(TN)[:, None] * STRIDE + jnp.arange(STACK)[None, :]
    x_stk = xs[:, widx, :].reshape(N_ROWS, INPUT_DIM)          # [N, F] raw
    mask_stk = mask_bool[:, widx]                              # [B, TN, STACK]
    # window is a valid target only if every frame inside it is masked
    code_ids_mask = jnp.all(mask_stk, axis=-1).astype(jnp.float32)   # [B, TN]

    # --- N-on-lanes layouts + lane padding to the row tile ---
    n_pad = _round_up(N_ROWS, ROW_TILE)
    x_fn = jnp.pad(x_stk.T, ((0, 0), (0, n_pad - N_ROWS)))          # [F, Npad]
    mask_sn = jnp.pad(
        mask_stk.reshape(N_ROWS, STACK).astype(jnp.float32).T,
        ((0, 0), (0, n_pad - N_ROWS)))                              # [S, Npad]
    mean_col = jnp.tile(mean, STACK)[:, None]                       # [F, 1]
    istd_col = jnp.tile(istd, STACK)[:, None]
    memb_col = jnp.tile(mask_emb, STACK)[:, None]

    # --- row-tiled fused Pallas kernel ---
    kernel = functools.partial(_bestrq_fused_kernel, G=G, C=C, E=EMB_DIM,
                               eps=NORM_EPS)
    grid = (n_pad // ROW_TILE,)

    def tile2(shape):
        return pl.BlockSpec(shape, lambda i: (0, i))

    def const2(shape):
        return pl.BlockSpec(shape, lambda i: (0, 0))

    in_specs = [
        tile2((INPUT_DIM, ROW_TILE)),            # x
        tile2((STACK, ROW_TILE)),                # mask
        const2((INPUT_DIM, 1)),                  # mean
        const2((INPUT_DIM, 1)),                  # istd
        const2((INPUT_DIM, 1)),                  # mask embedding
        const2((INPUT_DIM, STACK)),              # mask expander
        const2((G * EMB_DIM, INPUT_DIM)),        # projection^T (bf16)
        const2((G * C, EMB_DIM)),                # codebook (bf16)
        const2((G * C, 1)),                      # 0.5*||cb||^2 (f32)
        const2((HIDDEN, INPUT_DIM)),             # enc w1^T (bf16)
        const2((HIDDEN, 1)),                     # enc b1
        const2((ENC_DIM, HIDDEN)),               # enc w2^T (bf16)
        const2((ENC_DIM, 1)),                    # enc b2
        const2((G * C, ENC_DIM)),                # head W (bf16)
        const2((G * C, 1)),                      # head b
    ]
    out_specs = (tile2((G, ROW_TILE)),
                 tile2((G, ROW_TILE)),
                 tile2((G, ROW_TILE)))

    codes_gn, nll_gn, pred_gn = pl.pallas_call(
        kernel,
        grid=grid,
        out_shape=(jax.ShapeDtypeStruct((G, n_pad), jnp.int32),
                   jax.ShapeDtypeStruct((G, n_pad), jnp.float32),
                   jax.ShapeDtypeStruct((G, n_pad), jnp.int32)),
        in_specs=in_specs,
        out_specs=out_specs,
        compiler_params=pltpu.CompilerParams(
            dimension_semantics=("parallel",)),
    )(x_fn, mask_sn, mean_col, istd_col, memb_col,
      params['expand_t'], params['proj_t'], params['cb_t'], params['cb_hsq'],
      params['enc_w1_t'], params['enc_b1'], params['enc_w2_t'],
      params['enc_b2'], params['head_w_t'], params['head_b_t'])

    # drop lane padding
    codes_gn = codes_gn[:, :N_ROWS]
    nll_gn = nll_gn[:, :N_ROWS]
    pred_gn = pred_gn[:, :N_ROWS]

    # --- encoder output pad mask (stand-in for the real subsampled mask) ---
    n_valid = jnp.maximum((xs_lens - STACK) // STRIDE + 1, 0)
    out_mask = (jnp.arange(TN)[None, :] < n_valid[:, None]).astype(jnp.float32)

    # --- final scalar reductions (glue) ---
    codes_gbt = codes_gn.reshape(G, B, TN)
    nll_gbt = nll_gn.reshape(G, B, TN)
    pred_gbt = pred_gn.reshape(G, B, TN)

    masks = out_mask * code_ids_mask                           # [B, TN]
    numerator = jnp.sum(nll_gbt * masks[None, :, :])
    denominator = jnp.sum(masks) + 1e-5
    loss = numerator / (denominator * G)
    loss = loss + FEAT_REG_W * features_pen

    num_codes = jnp.sum(masks) * G
    # matches torch.unique(target_ids * masks.unsqueeze(2)).numel(): masked-out
    # positions collapse to 0.0 in the reference as well (id-0 collision is
    # present in the original module, kept for parity).
    flat = (codes_gbt.astype(jnp.float32) * masks[None, :, :]).reshape(-1)
    srt = jnp.sort(flat)
    uniq_num_codes = 1 + jnp.sum(srt[1:] != srt[:-1])

    ids_corr = (pred_gbt == codes_gbt).astype(jnp.float32)
    # identical to the reference whenever num_codes > 0 (it is an integer
    # count); the max() only guards the degenerate 0/0 case against NaN.
    codes_acc = (jnp.sum(ids_corr * masks[None, :, :])
                 / jnp.maximum(num_codes, 1e-5))

    return {
        'codes_acc': codes_acc,
        'features_l2': features_pen,
        'loss': loss,
        'num_codes': num_codes,
        'uniq_num_codes': uniq_num_codes,
    }


# ----------------------------- deterministic params --------------------------
def init_params(key):
    ks = jax.random.split(key, 7)
    G, C, E, D = NUM_CODEBOOKS, NUM_EMB, EMB_DIM, ENC_DIM
    limit = math.sqrt(6.0 / (INPUT_DIM + E * G))                    # xavier

    # torch-native parameter layouts / initializers
    embeddings = jax.random.normal(ks[2], (C, G, E), jnp.float32)   # [C, G, E]
    top_n_out = 0.02 * jax.random.normal(ks[3], (G, D, C), jnp.float32)
    top_n_out_bias = jnp.zeros((G, C), jnp.float32)
    projection = jax.random.uniform(ks[4], (INPUT_DIM, E * G), jnp.float32,
                                    minval=-limit, maxval=limit)
    enc_w1 = 0.02 * jax.random.normal(ks[5], (HIDDEN, INPUT_DIM), jnp.float32)
    enc_w2 = 0.02 * jax.random.normal(ks[6], (ENC_DIM, HIDDEN), jnp.float32)

    # --- derived N-on-lanes / MXU (bf16 weight) layouts, computed ONCE ---
    cb = jnp.transpose(embeddings, (1, 0, 2)).reshape(G * C, E)     # [G*C, E]
    cb_hsq = 0.5 * jnp.sum(cb * cb, axis=-1, keepdims=True)         # [G*C, 1]
    head_w_t = jnp.transpose(top_n_out, (0, 2, 1)).reshape(G * C, D)
    head_b_t = top_n_out_bias.reshape(G * C, 1)                     # [G*C, 1]
    # 0/1 expander: row f = s*NUM_MEL + m maps to stacked frame s
    expand_t = jnp.repeat(jnp.eye(STACK, dtype=jnp.float32), NUM_MEL, axis=0)

    return dict(
        signal_mean=0.1 * jax.random.normal(ks[0], (NUM_MEL,), jnp.float32),
        signal_istd=jax.random.uniform(ks[1], (NUM_MEL,), jnp.float32,
                                       minval=0.5, maxval=1.5),
        expand_t=expand_t,                                     # [F, STACK] f32
        proj_t=projection.T.astype(jnp.bfloat16),              # [G*E, F]
        cb_t=cb.astype(jnp.bfloat16),                          # [G*C, E]
        cb_hsq=cb_hsq,                                         # [G*C, 1] f32
        head_w_t=head_w_t.astype(jnp.bfloat16),                # [G*C, D]
        head_b_t=head_b_t,                                     # [G*C, 1] f32
        enc_w1_t=enc_w1.astype(jnp.bfloat16),                  # [H, F]
        enc_b1=jnp.zeros((HIDDEN, 1), jnp.float32),
        enc_w2_t=enc_w2.astype(jnp.bfloat16),                  # [D, H]
        enc_b2=jnp.zeros((ENC_DIM, 1), jnp.float32),
    )


if __name__ == "__main__":
    root = jax.random.PRNGKey(0)
    k_param, k_x, k_fwd = jax.random.split(root, 3)

    params = init_params(k_param)
    xs = jax.random.normal(k_x, (B, T, NUM_MEL), jnp.float32)
    xs_lens = jnp.array([T, T], dtype=jnp.int32)

    fwd = jax.jit(bestrq_forward)
    out = fwd(xs, xs_lens, params, k_fwd)
    out = jax.block_until_ready(out)
    print("KERNEL_OK")
</pallas_src>

<mosaic_0001>
module attributes {stable_mosaic.version = 11 : i64} {
  func.func @_bestrq_fused_kernel(%arg0: i32, %arg1: memref<32x128xf32, #tpu.memory_space<vmem>>, %arg2: memref<4x128xf32, #tpu.memory_space<vmem>>, %arg3: memref<32x1xf32, #tpu.memory_space<vmem>>, %arg4: memref<32x1xf32, #tpu.memory_space<vmem>>, %arg5: memref<32x1xf32, #tpu.memory_space<vmem>>, %arg6: memref<32x4xf32, #tpu.memory_space<vmem>>, %arg7: memref<32x32xbf16, #tpu.memory_space<vmem>>, %arg8: memref<128x16xbf16, #tpu.memory_space<vmem>>, %arg9: memref<128x1xf32, #tpu.memory_space<vmem>>, %arg10: memref<64x32xbf16, #tpu.memory_space<vmem>>, %arg11: memref<64x1xf32, #tpu.memory_space<vmem>>, %arg12: memref<32x64xbf16, #tpu.memory_space<vmem>>, %arg13: memref<32x1xf32, #tpu.memory_space<vmem>>, %arg14: memref<128x32xbf16, #tpu.memory_space<vmem>>, %arg15: memref<128x1xf32, #tpu.memory_space<vmem>>, %arg16: memref<2x128xi32, #tpu.memory_space<vmem>>, %arg17: memref<2x128xf32, #tpu.memory_space<vmem>>, %arg18: memref<2x128xi32, #tpu.memory_space<vmem>>) attributes {dimension_semantics = [#tpu.dimension_semantics<parallel>], iteration_bounds = array<i64: 1>, scalar_prefetch = 0 : i64, scratch_operands = 0 : i64, tpu.core_type = #tpu.core_type<tc>, window_params = [{transform_indices = @transform_0, window_bounds = array<i64: 32, 128>}, {transform_indices = @transform_1, window_bounds = array<i64: 4, 128>}, {pipeline_mode = #tpu.pipeline_mode<synchronous>, transform_indices = @transform_2, window_bounds = array<i64: 32, 1>}, {pipeline_mode = #tpu.pipeline_mode<synchronous>, transform_indices = @transform_3, window_bounds = array<i64: 32, 1>}, {pipeline_mode = #tpu.pipeline_mode<synchronous>, transform_indices = @transform_4, window_bounds = array<i64: 32, 1>}, {pipeline_mode = #tpu.pipeline_mode<synchronous>, transform_indices = @transform_5, window_bounds = array<i64: 32, 4>}, {pipeline_mode = #tpu.pipeline_mode<synchronous>, transform_indices = @transform_6, window_bounds = array<i64: 32, 32>}, {pipeline_mode = #tpu.pipeline_mode<synchronous>, transform_indices = @transform_7, window_bounds = array<i64: 128, 16>}, {pipeline_mode = #tpu.pipeline_mode<synchronous>, transform_indices = @transform_8, window_bounds = array<i64: 128, 1>}, {pipeline_mode = #tpu.pipeline_mode<synchronous>, transform_indices = @transform_9, window_bounds = array<i64: 64, 32>}, {pipeline_mode = #tpu.pipeline_mode<synchronous>, transform_indices = @transform_10, window_bounds = array<i64: 64, 1>}, {pipeline_mode = #tpu.pipeline_mode<synchronous>, transform_indices = @transform_11, window_bounds = array<i64: 32, 64>}, {pipeline_mode = #tpu.pipeline_mode<synchronous>, transform_indices = @transform_12, window_bounds = array<i64: 32, 1>}, {pipeline_mode = #tpu.pipeline_mode<synchronous>, transform_indices = @transform_13, window_bounds = array<i64: 128, 32>}, {pipeline_mode = #tpu.pipeline_mode<synchronous>, transform_indices = @transform_14, window_bounds = array<i64: 128, 1>}, {transform_indices = @transform_15, window_bounds = array<i64: 2, 128>}, {transform_indices = @transform_16, window_bounds = array<i64: 2, 128>}, {transform_indices = @transform_17, window_bounds = array<i64: 2, 128>}]} {
    %c0 = arith.constant 0 : index
    %c0_0 = arith.constant 0 : index
    %0 = vector.load %arg1[%c0, %c0_0] : memref<32x128xf32, #tpu.memory_space<vmem>>, vector<32x128xf32>
    %c0_1 = arith.constant 0 : index
    %c0_2 = arith.constant 0 : index
    %1 = vector.load %arg3[%c0_1, %c0_2] : memref<32x1xf32, #tpu.memory_space<vmem>>, vector<32x1xf32>
    %2 = vector.broadcast %1 : vector<32x1xf32> to vector<32x128xf32>
    %3 = arith.subf %0, %2 : vector<32x128xf32>
    %c0_3 = arith.constant 0 : index
    %c0_4 = arith.constant 0 : index
    %4 = vector.load %arg4[%c0_3, %c0_4] : memref<32x1xf32, #tpu.memory_space<vmem>>, vector<32x1xf32>
    %5 = vector.broadcast %4 : vector<32x1xf32> to vector<32x128xf32>
    %6 = arith.mulf %3, %5 : vector<32x128xf32>
    %c0_5 = arith.constant 0 : index
    %c0_6 = arith.constant 0 : index
    %7 = vector.load %arg6[%c0_5, %c0_6] : memref<32x4xf32, #tpu.memory_space<vmem>>, vector<32x4xf32>
    %c0_7 = arith.constant 0 : index
    %c0_8 = arith.constant 0 : index
    %8 = vector.load %arg2[%c0_7, %c0_8] : memref<4x128xf32, #tpu.memory_space<vmem>>, vector<4x128xf32>
    %cst = arith.constant dense<0.000000e+00> : vector<32x128xf32>
    %9 = tpu.matmul %7, %8, %cst {dimension_numbers = #tpu.dot_dimension_numbers<[1], [0], [0], [1], [0, 0, 1, 1], [], []>} : vector<32x4xf32>, vector<4x128xf32>, vector<32x128xf32> -> vector<32x128xf32>
    %c0_9 = arith.constant 0 : index
    %c0_10 = arith.constant 0 : index
    %10 = vector.load %arg5[%c0_9, %c0_10] : memref<32x1xf32, #tpu.memory_space<vmem>>, vector<32x1xf32>
    %11 = vector.broadcast %10 : vector<32x1xf32> to vector<32x128xf32>
    %12 = arith.subf %11, %6 : vector<32x128xf32>
    %13 = arith.mulf %9, %12 : vector<32x128xf32>
    %14 = arith.addf %6, %13 : vector<32x128xf32>
    %cst_11 = arith.constant dense<0.000000e+00> : vector<128xf32>
    %15 = vector.multi_reduction <add>, %6, %cst_11 [0] : vector<32x128xf32> to vector<128xf32>
    %16 = vector.shape_cast %15 : vector<128xf32> to vector<1x128xf32>
    %cst_12 = arith.constant 3.200000e+01 : f32
    %17 = vector.broadcast %cst_12 : f32 to vector<1x128xf32>
    %18 = arith.divf %16, %17 : vector<1x128xf32>
    %19 = vector.broadcast %18 : vector<1x128xf32> to vector<32x128xf32>
    %20 = arith.subf %6, %19 : vector<32x128xf32>
    %21 = arith.mulf %20, %20 : vector<32x128xf32>
    %cst_13 = arith.constant dense<0.000000e+00> : vector<128xf32>
    %22 = vector.multi_reduction <add>, %21, %cst_13 [0] : vector<32x128xf32> to vector<128xf32>
    %23 = vector.shape_cast %22 : vector<128xf32> to vector<1x128xf32>
    %cst_14 = arith.constant 3.200000e+01 : f32
    %24 = vector.broadcast %cst_14 : f32 to vector<1x128xf32>
    %25 = arith.divf %23, %24 : vector<1x128xf32>
    %26 = vector.broadcast %18 : vector<1x128xf32> to vector<32x128xf32>
    %27 = arith.subf %6, %26 : vector<32x128xf32>
    %cst_15 = arith.constant 9.99999974E-6 : f32
    %28 = vector.broadcast %cst_15 : f32 to vector<1x128xf32>
    %29 = arith.addf %25, %28 : vector<1x128xf32>
    %30 = math.rsqrt %29 : vector<1x128xf32>
    %31 = vector.broadcast %30 : vector<1x128xf32> to vector<32x128xf32>
    %32 = arith.mulf %27, %31 : vector<32x128xf32>
    %c0_16 = arith.constant 0 : index
    %c0_17 = arith.constant 0 : index
    %33 = vector.load %arg7[%c0_16, %c0_17] : memref<32x32xbf16, #tpu.memory_space<vmem>>, vector<32x32xbf16>
    %34 = arith.truncf %32 : vector<32x128xf32> to vector<32x128xbf16>
    %cst_18 = arith.constant dense<0.000000e+00> : vector<32x128xf32>
    %35 = tpu.matmul %33, %34, %cst_18 {dimension_numbers = #tpu.dot_dimension_numbers<[1], [0], [0], [1], [0, 0, 1, 1], [], []>} : vector<32x32xbf16>, vector<32x128xbf16>, vector<32x128xf32> -> vector<32x128xf32>
    %36 = arith.truncf %35 : vector<32x128xf32> to vector<32x128xbf16>
    %c0_19 = arith.constant 0 : index
    %c0_20 = arith.constant 0 : index
    %37 = vector.load %arg8[%c0_19, %c0_20] : memref<128x16xbf16, #tpu.memory_space<vmem>>, vector<64x16xbf16>
    %38 = vector.extract_strided_slice %36 {offsets = [0, 0], sizes = [16, 128], strides = [1, 1]} : vector<32x128xbf16> to vector<16x128xbf16>
    %cst_21 = arith.constant dense<0.000000e+00> : vector<64x128xf32>
    %39 = tpu.matmul %37, %38, %cst_21 {dimension_numbers = #tpu.dot_dimension_numbers<[1], [0], [0], [1], [0, 0, 1, 1], [], []>} : vector<64x16xbf16>, vector<16x128xbf16>, vector<64x128xf32> -> vector<64x128xf32>
    %c0_22 = arith.constant 0 : index
    %c0_23 = arith.constant 0 : index
    %40 = vector.load %arg9[%c0_22, %c0_23] : memref<128x1xf32, #tpu.memory_space<vmem>>, vector<64x1xf32>
    %41 = vector.broadcast %40 : vector<64x1xf32> to vector<64x128xf32>
    %42 = arith.subf %39, %41 : vector<64x128xf32>
    %43 = tpu.iota {dimensions = array<i32: 0>} : vector<64x128xi32>
    %cst_24 = arith.constant dense<0xFF800000> : vector<128xf32>
    %44 = vector.multi_reduction <maximumf>, %42, %cst_24 [0] : vector<64x128xf32> to vector<128xf32>
    %45 = vector.shape_cast %44 : vector<128xf32> to vector<1x128xf32>
    %46 = vector.broadcast %45 : vector<1x128xf32> to vector<64x128xf32>
    %47 = arith.cmpf oge, %42, %46 : vector<64x128xf32>
    %c63_i32 = arith.constant 63 : i32
    %48 = vector.broadcast %c63_i32 : i32 to vector<64x128xi32>
    %49 = arith.select %47, %43, %48 : vector<64x128xi1>, vector<64x128xi32>
    %cst_25 = arith.constant dense<2147483647> : vector<128xi32>
    %50 = vector.multi_reduction <minsi>, %49, %cst_25 [0] : vector<64x128xi32> to vector<128xi32>
    %51 = vector.shape_cast %50 : vector<128xi32> to vector<1x128xi32>
    %c0_26 = arith.constant 0 : index
    %c0_27 = arith.constant 0 : index
    %52 = vector.load %arg16[%c0_26, %c0_27] : memref<2x128xi32, #tpu.memory_space<vmem>>, vector<1x128xi32>
    tpu.vector_store %arg16[%c0_26, %c0_27], %51 {strides = array<i32>} : memref<2x128xi32, #tpu.memory_space<vmem>>, vector<1x128xi32>,
    %c64 = arith.constant 64 : index
    %c0_28 = arith.constant 0 : index
    %53 = vector.load %arg8[%c64, %c0_28] : memref<128x16xbf16, #tpu.memory_space<vmem>>, vector<64x16xbf16>
    %54 = vector.extract_strided_slice %36 {offsets = [16, 0], sizes = [16, 128], strides = [1, 1]} : vector<32x128xbf16> to vector<16x128xbf16>
    %cst_29 = arith.constant dense<0.000000e+00> : vector<64x128xf32>
    %55 = tpu.matmul %53, %54, %cst_29 {dimension_numbers = #tpu.dot_dimension_numbers<[1], [0], [0], [1], [0, 0, 1, 1], [], []>} : vector<64x16xbf16>, vector<16x128xbf16>, vector<64x128xf32> -> vector<64x128xf32>
    %c64_30 = arith.constant 64 : index
    %c0_31 = arith.constant 0 : index
    %56 = vector.load %arg9[%c64_30, %c0_31] : memref<128x1xf32, #tpu.memory_space<vmem>>, vector<64x1xf32>
    %57 = vector.broadcast %56 : vector<64x1xf32> to vector<64x128xf32>
    %58 = arith.subf %55, %57 : vector<64x128xf32>
    %59 = tpu.iota {dimensions = array<i32: 0>} : vector<64x128xi32>
    %cst_32 = arith.constant dense<0xFF800000> : vector<128xf32>
    %60 = vector.multi_reduction <maximumf>, %58, %cst_32 [0] : vector<64x128xf32> to vector<128xf32>
    %61 = vector.shape_cast %60 : vector<128xf32> to vector<1x128xf32>
    %62 = vector.broadcast %61 : vector<1x128xf32> to vector<64x128xf32>
    %63 = arith.cmpf oge, %58, %62 : vector<64x128xf32>
    %c63_i32_33 = arith.constant 63 : i32
    %64 = vector.broadcast %c63_i32_33 : i32 to vector<64x128xi32>
    %65 = arith.select %63, %59, %64 : vector<64x128xi1>, vector<64x128xi32>
    %cst_34 = arith.constant dense<2147483647> : vector<128xi32>
    %66 = vector.multi_reduction <minsi>, %65, %cst_34 [0] : vector<64x128xi32> to vector<128xi32>
    %67 = vector.shape_cast %66 : vector<128xi32> to vector<1x128xi32>
    %c1 = arith.constant 1 : index
    %c0_35 = arith.constant 0 : index
    %68 = vector.load %arg16[%c1, %c0_35] : memref<2x128xi32, #tpu.memory_space<vmem>>, vector<1x128xi32>
    tpu.vector_store %arg16[%c1, %c0_35], %67 {strides = array<i32>} : memref<2x128xi32, #tpu.memory_space<vmem>>, vector<1x128xi32>,
    %c0_36 = arith.constant 0 : index
    %c0_37 = arith.constant 0 : index
    %69 = vector.load %arg10[%c0_36, %c0_37] : memref<64x32xbf16, #tpu.memory_space<vmem>>, vector<64x32xbf16>
    %70 = arith.truncf %14 : vector<32x128xf32> to vector<32x128xbf16>
    %cst_38 = arith.constant dense<0.000000e+00> : vector<64x128xf32>
    %71 = tpu.matmul %69, %70, %cst_38 {dimension_numbers = #tpu.dot_dimension_numbers<[1], [0], [0], [1], [0, 0, 1, 1], [], []>} : vector<64x32xbf16>, vector<32x128xbf16>, vector<64x128xf32> -> vector<64x128xf32>
    %c0_39 = arith.constant 0 : index
    %c0_40 = arith.constant 0 : index
    %72 = vector.load %arg11[%c0_39, %c0_40] : memref<64x1xf32, #tpu.memory_space<vmem>>, vector<64x1xf32>
    %73 = vector.broadcast %72 : vector<64x1xf32> to vector<64x128xf32>
    %74 = arith.addf %71, %73 : vector<64x128xf32>
    %cst_41 = arith.constant 0.000000e+00 : f32
    %75 = vector.broadcast %cst_41 : f32 to vector<64x128xf32>
    %76 = arith.maximumf %74, %75 : vector<64x128xf32>
    %c0_42 = arith.constant 0 : index
    %c0_43 = arith.constant 0 : index
    %77 = vector.load %arg12[%c0_42, %c0_43] : memref<32x64xbf16, #tpu.memory_space<vmem>>, vector<32x64xbf16>
    %78 = arith.truncf %76 : vector<64x128xf32> to vector<64x128xbf16>
    %cst_44 = arith.constant dense<0.000000e+00> : vector<32x128xf32>
    %79 = tpu.matmul %77, %78, %cst_44 {dimension_numbers = #tpu.dot_dimension_numbers<[1], [0], [0], [1], [0, 0, 1, 1], [], []>} : vector<32x64xbf16>, vector<64x128xbf16>, vector<32x128xf32> -> vector<32x128xf32>
    %c0_45 = arith.constant 0 : index
    %c0_46 = arith.constant 0 : index
    %80 = vector.load %arg13[%c0_45, %c0_46] : memref<32x1xf32, #tpu.memory_space<vmem>>, vector<32x1xf32>
    %81 = vector.broadcast %80 : vector<32x1xf32> to vector<32x128xf32>
    %82 = arith.addf %79, %81 : vector<32x128xf32>
    %83 = arith.truncf %82 : vector<32x128xf32> to vector<32x128xbf16>
    %c0_47 = arith.constant 0 : index
    %c0_48 = arith.constant 0 : index
    %84 = vector.load %arg14[%c0_47, %c0_48] : memref<128x32xbf16, #tpu.memory_space<vmem>>, vector<64x32xbf16>
    %cst_49 = arith.constant dense<0.000000e+00> : vector<64x128xf32>
    %85 = tpu.matmul %84, %83, %cst_49 {dimension_numbers = #tpu.dot_dimension_numbers<[1], [0], [0], [1], [0, 0, 1, 1], [], []>} : vector<64x32xbf16>, vector<32x128xbf16>, vector<64x128xf32> -> vector<64x128xf32>
    %c0_50 = arith.constant 0 : index
    %c0_51 = arith.constant 0 : index
    %86 = vector.load %arg15[%c0_50, %c0_51] : memref<128x1xf32, #tpu.memory_space<vmem>>, vector<64x1xf32>
    %87 = vector.broadcast %86 : vector<64x1xf32> to vector<64x128xf32>
    %88 = arith.addf %85, %87 : vector<64x128xf32>
    %89 = tpu.iota {dimensions = array<i32: 0>} : vector<64x128xi32>
    %c0_52 = arith.constant 0 : index
    %c0_53 = arith.constant 0 : index
    %90 = vector.load %arg16[%c0_52, %c0_53] : memref<2x128xi32, #tpu.memory_space<vmem>>, vector<1x128xi32>
    %cst_54 = arith.constant dense<0xFF800000> : vector<128xf32>
    %91 = vector.multi_reduction <maximumf>, %88, %cst_54 [0] : vector<64x128xf32> to vector<128xf32>
    %92 = vector.shape_cast %91 : vector<128xf32> to vector<1x128xf32>
    %93 = vector.broadcast %92 : vector<1x128xf32> to vector<64x128xf32>
    %94 = arith.subf %88, %93 : vector<64x128xf32>
    %95 = math.exp %94 : vector<64x128xf32>
    %cst_55 = arith.constant dense<0.000000e+00> : vector<128xf32>
    %96 = vector.multi_reduction <add>, %95, %cst_55 [0] : vector<64x128xf32> to vector<128xf32>
    %97 = vector.shape_cast %96 : vector<128xf32> to vector<1x128xf32>
    %98 = math.log %97 : vector<1x128xf32>
    %99 = arith.addf %92, %98 : vector<1x128xf32>
    %100 = vector.broadcast %90 : vector<1x128xi32> to vector<64x128xi32>
    %101 = arith.cmpi eq, %89, %100 : vector<64x128xi32>
    %cst_56 = arith.constant 0.000000e+00 : f32
    %102 = vector.broadcast %cst_56 : f32 to vector<64x128xf32>
    %103 = arith.select %101, %88, %102 : vector<64x128xi1>, vector<64x128xf32>
    %cst_57 = arith.constant dense<0.000000e+00> : vector<128xf32>
    %104 = vector.multi_reduction <add>, %103, %cst_57 [0] : vector<64x128xf32> to vector<128xf32>
    %105 = vector.shape_cast %104 : vector<128xf32> to vector<1x128xf32>
    %106 = arith.subf %99, %105 : vector<1x128xf32>
    %c0_58 = arith.constant 0 : index
    %c0_59 = arith.constant 0 : index
    %107 = vector.load %arg17[%c0_58, %c0_59] : memref<2x128xf32, #tpu.memory_space<vmem>>, vector<1x128xf32>
    tpu.vector_store %arg17[%c0_58, %c0_59], %106 {strides = array<i32>} : memref<2x128xf32, #tpu.memory_space<vmem>>, vector<1x128xf32>,
    %108 = vector.broadcast %92 : vector<1x128xf32> to vector<64x128xf32>
    %109 = arith.cmpf oge, %88, %108 : vector<64x128xf32>
    %c63_i32_60 = arith.constant 63 : i32
    %110 = vector.broadcast %c63_i32_60 : i32 to vector<64x128xi32>
    %111 = arith.select %109, %89, %110 : vector<64x128xi1>, vector<64x128xi32>
    %cst_61 = arith.constant dense<2147483647> : vector<128xi32>
    %112 = vector.multi_reduction <minsi>, %111, %cst_61 [0] : vector<64x128xi32> to vector<128xi32>
    %113 = vector.shape_cast %112 : vector<128xi32> to vector<1x128xi32>
    %c0_62 = arith.constant 0 : index
    %c0_63 = arith.constant 0 : index
    %114 = vector.load %arg18[%c0_62, %c0_63] : memref<2x128xi32, #tpu.memory_space<vmem>>, vector<1x128xi32>
    tpu.vector_store %arg18[%c0_62, %c0_63], %113 {strides = array<i32>} : memref<2x128xi32, #tpu.memory_space<vmem>>, vector<1x128xi32>,
    %c64_64 = arith.constant 64 : index
    %c0_65 = arith.constant 0 : index
    %115 = vector.load %arg14[%c64_64, %c0_65] : memref<128x32xbf16, #tpu.memory_space<vmem>>, vector<64x32xbf16>
    %cst_66 = arith.constant dense<0.000000e+00> : vector<64x128xf32>
    %116 = tpu.matmul %115, %83, %cst_66 {dimension_numbers = #tpu.dot_dimension_numbers<[1], [0], [0], [1], [0, 0, 1, 1], [], []>} : vector<64x32xbf16>, vector<32x128xbf16>, vector<64x128xf32> -> vector<64x128xf32>
    %c64_67 = arith.constant 64 : index
    %c0_68 = arith.constant 0 : index
    %117 = vector.load %arg15[%c64_67, %c0_68] : memref<128x1xf32, #tpu.memory_space<vmem>>, vector<64x1xf32>
    %118 = vector.broadcast %117 : vector<64x1xf32> to vector<64x128xf32>
    %119 = arith.addf %116, %118 : vector<64x128xf32>
    %120 = tpu.iota {dimensions = array<i32: 0>} : vector<64x128xi32>
    %c1_69 = arith.constant 1 : index
    %c0_70 = arith.constant 0 : index
    %121 = vector.load %arg16[%c1_69, %c0_70] : memref<2x128xi32, #tpu.memory_space<vmem>>, vector<1x128xi32>
    %cst_71 = arith.constant dense<0xFF800000> : vector<128xf32>
    %122 = vector.multi_reduction <maximumf>, %119, %cst_71 [0] : vector<64x128xf32> to vector<128xf32>
    %123 = vector.shape_cast %122 : vector<128xf32> to vector<1x128xf32>
    %124 = vector.broadcast %123 : vector<1x128xf32> to vector<64x128xf32>
    %125 = arith.subf %119, %124 : vector<64x128xf32>
    %126 = math.exp %125 : vector<64x128xf32>
    %cst_72 = arith.constant dense<0.000000e+00> : vector<128xf32>
    %127 = vector.multi_reduction <add>, %126, %cst_72 [0] : vector<64x128xf32> to vector<128xf32>
    %128 = vector.shape_cast %127 : vector<128xf32> to vector<1x128xf32>
    %129 = math.log %128 : vector<1x128xf32>
    %130 = arith.addf %123, %129 : vector<1x128xf32>
    %131 = vector.broadcast %121 : vector<1x128xi32> to vector<64x128xi32>
    %132 = arith.cmpi eq, %120, %131 : vector<64x128xi32>
    %cst_73 = arith.constant 0.000000e+00 : f32
    %133 = vector.broadcast %cst_73 : f32 to vector<64x128xf32>
    %134 = arith.select %132, %119, %133 : vector<64x128xi1>, vector<64x128xf32>
    %cst_74 = arith.constant dense<0.000000e+00> : vector<128xf32>
    %135 = vector.multi_reduction <add>, %134, %cst_74 [0] : vector<64x128xf32> to vector<128xf32>
    %136 = vector.shape_cast %135 : vector<128xf32> to vector<1x128xf32>
    %137 = arith.subf %130, %136 : vector<1x128xf32>
    %c1_75 = arith.constant 1 : index
    %c0_76 = arith.constant 0 : index
    %138 = vector.load %arg17[%c1_75, %c0_76] : memref<2x128xf32, #tpu.memory_space<vmem>>, vector<1x128xf32>
    tpu.vector_store %arg17[%c1_75, %c0_76], %137 {strides = array<i32>} : memref<2x128xf32, #tpu.memory_space<vmem>>, vector<1x128xf32>,
    %139 = vector.broadcast %123 : vector<1x128xf32> to vector<64x128xf32>
    %140 = arith.cmpf oge, %119, %139 : vector<64x128xf32>
    %c63_i32_77 = arith.constant 63 : i32
    %141 = vector.broadcast %c63_i32_77 : i32 to vector<64x128xi32>
    %142 = arith.select %140, %120, %141 : vector<64x128xi1>, vector<64x128xi32>
    %cst_78 = arith.constant dense<2147483647> : vector<128xi32>
    %143 = vector.multi_reduction <minsi>, %142, %cst_78 [0] : vector<64x128xi32> to vector<128xi32>
    %144 = vector.shape_cast %143 : vector<128xi32> to vector<1x128xi32>
    %c1_79 = arith.constant 1 : index
    %c0_80 = arith.constant 0 : index
    %145 = vector.load %arg18[%c1_79, %c0_80] : memref<2x128xi32, #tpu.memory_space<vmem>>, vector<1x128xi32>
    tpu.vector_store %arg18[%c1_79, %c0_80], %144 {strides = array<i32>} : memref<2x128xi32, #tpu.memory_space<vmem>>, vector<1x128xi32>,
    return
  }
  func.func @transform_0(%arg0: i32) -> (i32, i32) {
    %c0_i32 = arith.constant 0 : i32
    %c0_i32_0 = arith.constant 0 : i32
    return %c0_i32, %arg0 : i32, i32
  }
  func.func @transform_1(%arg0: i32) -> (i32, i32) {
    %c0_i32 = arith.constant 0 : i32
    %c0_i32_0 = arith.constant 0 : i32
    return %c0_i32, %arg0 : i32, i32
  }
  func.func @transform_2(%arg0: i32) -> (i32, i32) {
    %c0_i32 = arith.constant 0 : i32
    %c0_i32_0 = arith.constant 0 : i32
    %c0_i32_1 = arith.constant 0 : i32
    return %c0_i32, %c0_i32_0 : i32, i32
  }
  func.func @transform_3(%arg0: i32) -> (i32, i32) {
    %c0_i32 = arith.constant 0 : i32
    %c0_i32_0 = arith.constant 0 : i32
    %c0_i32_1 = arith.constant 0 : i32
    return %c0_i32, %c0_i32_0 : i32, i32
  }
  func.func @transform_4(%arg0: i32) -> (i32, i32) {
    %c0_i32 = arith.constant 0 : i32
    %c0_i32_0 = arith.constant 0 : i32
    %c0_i32_1 = arith.constant 0 : i32
    return %c0_i32, %c0_i32_0 : i32, i32
  }
  func.func @transform_5(%arg0: i32) -> (i32, i32) {
    %c0_i32 = arith.constant 0 : i32
    %c0_i32_0 = arith.constant 0 : i32
    %c0_i32_1 = arith.constant 0 : i32
    return %c0_i32, %c0_i32_0 : i32, i32
  }
  func.func @transform_6(%arg0: i32) -> (i32, i32) {
    %c0_i32 = arith.constant 0 : i32
    %c0_i32_0 = arith.constant 0 : i32
    %c0_i32_1 = arith.constant 0 : i32
    return %c0_i32, %c0_i32_0 : i32, i32
  }
  func.func @transform_7(%arg0: i32) -> (i32, i32) {
    %c0_i32 = arith.constant 0 : i32
    %c0_i32_0 = arith.constant 0 : i32
    %c0_i32_1 = arith.constant 0 : i32
    return %c0_i32, %c0_i32_0 : i32, i32
  }
  func.func @transform_8(%arg0: i32) -> (i32, i32) {
    %c0_i32 = arith.constant 0 : i32
    %c0_i32_0 = arith.constant 0 : i32
    %c0_i32_1 = arith.constant 0 : i32
    return %c0_i32, %c0_i32_0 : i32, i32
  }
  func.func @transform_9(%arg0: i32) -> (i32, i32) {
    %c0_i32 = arith.constant 0 : i32
    %c0_i32_0 = arith.constant 0 : i32
    %c0_i32_1 = arith.constant 0 : i32
    return %c0_i32, %c0_i32_0 : i32, i32
  }
  func.func @transform_10(%arg0: i32) -> (i32, i32) {
    %c0_i32 = arith.constant 0 : i32
    %c0_i32_0 = arith.constant 0 : i32
    %c0_i32_1 = arith.constant 0 : i32
    return %c0_i32, %c0_i32_0 : i32, i32
  }
  func.func @transform_11(%arg0: i32) -> (i32, i32) {
    %c0_i32 = arith.constant 0 : i32
    %c0_i32_0 = arith.constant 0 : i32
    %c0_i32_1 = arith.constant 0 : i32
    return %c0_i32, %c0_i32_0 : i32, i32
  }
  func.func @transform_12(%arg0: i32) -> (i32, i32) {
    %c0_i32 = arith.constant 0 : i32
    %c0_i32_0 = arith.constant 0 : i32
    %c0_i32_1 = arith.constant 0 : i32
    return %c0_i32, %c0_i32_0 : i32, i32
  }
  func.func @transform_13(%arg0: i32) -> (i32, i32) {
    %c0_i32 = arith.constant 0 : i32
    %c0_i32_0 = arith.constant 0 : i32
    %c0_i32_1 = arith.constant 0 : i32
    return %c0_i32, %c0_i32_0 : i32, i32
  }
  func.func @transform_14(%arg0: i32) -> (i32, i32) {
    %c0_i32 = arith.constant 0 : i32
    %c0_i32_0 = arith.constant 0 : i32
    %c0_i32_1 = arith.constant 0 : i32
    return %c0_i32, %c0_i32_0 : i32, i32
  }
  func.func @transform_15(%arg0: i32) -> (i32, i32) {
    %c0_i32 = arith.constant 0 : i32
    %c0_i32_0 = arith.constant 0 : i32
    return %c0_i32, %arg0 : i32, i32
  }
  func.func @transform_16(%arg0: i32) -> (i32, i32) {
    %c0_i32 = arith.constant 0 : i32
    %c0_i32_0 = arith.constant 0 : i32
    return %c0_i32, %arg0 : i32, i32
  }
  func.func @transform_17(%arg0: i32) -> (i32, i32) {
    %c0_i32 = arith.constant 0 : i32
    %c0_i32_0 = arith.constant 0 : i32
    return %c0_i32, %arg0 : i32, i32
  }
}

</mosaic_0001>

<llo_original>
// kernel: tile.28
$region0: #{tile.28}
  #allocation0 [shape = 's32[1]{0}', space=sflag, size = 0x4, scoped, tag = 'scoped memory for tile.28']
  %s0 = inlined_call_operand.vmem [shape: f32[8], index: 0, kind: input, shape index: {}]
  %s1 = inlined_call_operand.vmem [shape: f32[4,8], index: 1, kind: output, shape index: {}]
  // Predicated region
  $region2: #{tile.28} parent=0 // pred_check
    _
  $region3: #{tile.28} parent=0 // pred_check_branch
    %3 = sbr.rel (0) target = $region5
  $region4: #{tile.28} parent=0 // pred_region
    _
  $region5: #{tile.28} parent=0 // pred_fallthru
    _
  %v4 = vld [vmem:[%s0] ss:$0 sm:$0xff]
  %5 = vst [vmem:[%s1] sm:$0xf] %v4

// kernel: tile.2
$region0: #{tile.2}
  %s0 = inlined_call_operand.vmem [shape: f32[4,8], index: 0, kind: input, shape index: {}]
  %s1 = inlined_call_operand.vmem [shape: f32[32,1], index: 1, kind: output, shape index: {}]
  $region1: #{tile.2} parent=0
    #allocation0 [shape = 'u8[4096]{0}', space=vmem, size = 0x1000, scoped, tag = 'scoped mem for input reshape']
    %s3 = sshllo.u32 0, 4
    %v4 = vld [vmem:[%s0] sm:%s3]
    %5 = vst [vmem:[#allocation0] sm:%s3] %v4
    %v6 = vld [vmem:[#allocation0] sm:$0xf]
    %vm7 = vcmask 7168
    %8 = vst.msk [vmem:[%s1] ss:$8 sm:$0xf] %vm7, %v6
    %v9 = vld [vmem:[#allocation0] sm:$0xf]
    %10 = vrot.lane.b32.xlu0 %v9, 127
    %v11 = vpop.permute.xlu0 %10
    %vm12 = vcmask 7168
    %s13 = scalar_lea.vmem %s1, 1
    %14 = vst.msk [vmem:[%s13] ss:$8 sm:$0xf] %vm12, %v11
    %v15 = vld [vmem:[#allocation0] sm:$0xf]
    %16 = vrot.lane.b32.xlu0 %v15, 126
    %v17 = vpop.permute.xlu0 %16
    %vm18 = vcmask 7168
    %s19 = scalar_lea.vmem %s1, 2
    %20 = vst.msk [vmem:[%s19] ss:$8 sm:$0xf] %vm18, %v17
    %v21 = vld [vmem:[#allocation0] sm:$0xf]
    %22 = vrot.lane.b32.xlu0 %v21, 125
    %v23 = vpop.permute.xlu0 %22
    %vm24 = vcmask 7168
    %s25 = scalar_lea.vmem %s1, 3
    %26 = vst.msk [vmem:[%s25] ss:$8 sm:$0xf] %vm24, %v23
    %v27 = vld [vmem:[#allocation0] sm:$0xf]
    %28 = vrot.lane.b32.xlu0 %v27, 124
    %v29 = vpop.permute.xlu0 %28
    %vm30 = vcmask 7168
    %s31 = scalar_lea.vmem %s1, 4
    %32 = vst.msk [vmem:[%s31] ss:$8 sm:$0xf] %vm30, %v29
    %v33 = vld [vmem:[#allocation0] sm:$0xf]
    %34 = vrot.lane.b32.xlu0 %v33, 123
    %v35 = vpop.permute.xlu0 %34
    %vm36 = vcmask 7168
    %s37 = scalar_lea.vmem %s1, 5
    %38 = vst.msk [vmem:[%s37] ss:$8 sm:$0xf] %vm36, %v35
    %v39 = vld [vmem:[#allocation0] sm:$0xf]
    %40 = vrot.lane.b32.xlu0 %v39, 122
    %v41 = vpop.permute.xlu0 %40
    %vm42 = vcmask 7168
    %s43 = scalar_lea.vmem %s1, 6
    %44 = vst.msk [vmem:[%s43] ss:$8 sm:$0xf] %vm42, %v41
    %v45 = vld [vmem:[#allocation0] sm:$0xf]
    %46 = vrot.lane.b32.xlu0 %v45, 121
    %v47 = vpop.permute.xlu0 %46
    %vm48 = vcmask 7168
    %s49 = scalar_lea.vmem %s1, 7
    %50 = vst.msk [vmem:[%s49] ss:$8 sm:$0xf] %vm48, %v47

// kernel: mul.4
$region0: #{mul.4}
  #allocation0 [shape = 's32[1]{0}', space=sflag, size = 0x4, scoped, tag = 'scoped memory for mul.4']
  %s0 = inlined_call_operand.vmem [shape: f32[16], index: 0, kind: input, shape index: {}]
  %s1 = inlined_call_operand.vmem [shape: f32[16], index: 1, kind: input, shape index: {}]
  %s2 = inlined_call_operand.vmem [shape: f32[16], index: 2, kind: output, shape index: {}]
  %v3 = vld [vmem:[%s0] sm:$0x1]
  %v4 = vld [vmem:[%s1] sm:$0x1]
  %5 = xla_tuple %v3, %v4
  %6 = xla_tuple %5
  %v7 = vmul.f32 %v3, %v4
  %8 = xla_tuple %v7
  %9 = vst [vmem:[%s2] sm:$0x1] %v7

// kernel: bestrq_forward.1
$region0: #{bestrq_forward.1}
  #allocation0 [shape = 'u32[]', space=smem, size = 0x4, offset = 0x4, fixed_abs, tag = 'smem constant byte address 0x4 - core index']
  #allocation1 [shape = 'u32[144,128]{1,0:T(1,128)}', space=vmem, size = 0x12000, scoped, tag = 'internal scratch']
  %s0 = inlined_call_operand.vmem [shape: f32[32,128], index: 0, kind: input, shape index: {}]
  %s1 = inlined_call_operand.vmem [shape: f32[4,128], index: 1, kind: input, shape index: {}]
  %s2 = inlined_call_operand.vmem [shape: f32[32,1], index: 2, kind: input, shape index: {}]
  %s3 = inlined_call_operand.vmem [shape: f32[32,1], index: 3, kind: input, shape index: {}]
  %s4 = inlined_call_operand.vmem [shape: f32[32,1], index: 4, kind: input, shape index: {}]
  %s5 = inlined_call_operand.vmem [shape: f32[32,4], index: 5, kind: input, shape index: {}]
  %s6 = inlined_call_operand.vmem [shape: bf16[32,32], index: 6, kind: input, shape index: {}]
  %s7 = inlined_call_operand.vmem [shape: bf16[128,16], index: 7, kind: input, shape index: {}]
  %s8 = inlined_call_operand.vmem [shape: f32[128,1], index: 8, kind: input, shape index: {}]
  %s9 = inlined_call_operand.vmem [shape: bf16[64,32], index: 9, kind: input, shape index: {}]
  %s10 = inlined_call_operand.vmem [shape: f32[64,1], index: 10, kind: input, shape index: {}]
  %s11 = inlined_call_operand.vmem [shape: bf16[32,64], index: 11, kind: input, shape index: {}]
  %s12 = inlined_call_operand.vmem [shape: f32[32,1], index: 12, kind: input, shape index: {}]
  %s13 = inlined_call_operand.vmem [shape: bf16[128,32], index: 13, kind: input, shape index: {}]
  %s14 = inlined_call_operand.vmem [shape: f32[128,1], index: 14, kind: input, shape index: {}]
  %s15 = inlined_call_operand.vmem [shape: s32[2,128], index: 15, kind: output, shape index: {0}]
  %s16 = inlined_call_operand.vmem [shape: f32[2,128], index: 16, kind: output, shape index: {1}]
  %s17 = inlined_call_operand.vmem [shape: s32[2,128], index: 17, kind: output, shape index: {2}]
  %18 = xla_tuple %s15, %s16, %s17
  %s19 = sld [smem:[#allocation0]]
  $region86: #{bestrq_forward.1} parent=0
    _
  %s21 = ssub.s32 1, %s19
  %s22 = scalar_select 0, %s21, %s19
  // Predicated region
  $region2: #{bestrq_forward.1} parent=0 // pred_check
    _
  $region3: #{bestrq_forward.1} parent=0 // pred_check_branch
    %24 = sbr.rel (0) target = $region5
  $region4: #{bestrq_forward.1} parent=0 // pred_region
    _
  $region5: #{bestrq_forward.1} parent=0 // pred_fallthru
    _
  // Predicated region
  $region6: #{bestrq_forward.1} parent=0 // pred_check
    _
  $region7: #{bestrq_forward.1} parent=0 // pred_check_branch
    %26 = sbr.rel (0) target = $region9
  $region8: #{bestrq_forward.1} parent=0 // pred_region
    _
  $region9: #{bestrq_forward.1} parent=0 // pred_fallthru
    _
  // Predicated region
  $region10: #{bestrq_forward.1} parent=0 // pred_check
    _
  $region11: #{bestrq_forward.1} parent=0 // pred_check_branch
    %28 = sbr.rel (0) target = $region13
  $region12: #{bestrq_forward.1} parent=0 // pred_region
    _
  $region13: #{bestrq_forward.1} parent=0 // pred_fallthru
    _
  // Predicated region
  $region14: #{bestrq_forward.1} parent=0 // pred_check
    _
  $region15: #{bestrq_forward.1} parent=0 // pred_check_branch
    %30 = sbr.rel (0) target = $region17
  $region16: #{bestrq_forward.1} parent=0 // pred_region
    _
  $region17: #{bestrq_forward.1} parent=0 // pred_fallthru
    _
  // Predicated region
  $region18: #{bestrq_forward.1} parent=0 // pred_check
    _
  $region19: #{bestrq_forward.1} parent=0 // pred_check_branch
    %32 = sbr.rel (0) target = $region21
  $region20: #{bestrq_forward.1} parent=0 // pred_region
    _
  $region21: #{bestrq_forward.1} parent=0 // pred_fallthru
    _
  // Predicated region
  $region22: #{bestrq_forward.1} parent=0 // pred_check
    _
  $region23: #{bestrq_forward.1} parent=0 // pred_check_branch
    %34 = sbr.rel (0) target = $region25
  $region24: #{bestrq_forward.1} parent=0 // pred_region
    _
  $region25: #{bestrq_forward.1} parent=0 // pred_fallthru
    _
  // Predicated region
  $region26: #{bestrq_forward.1} parent=0 // pred_check
    _
  $region27: #{bestrq_forward.1} parent=0 // pred_check_branch
    %36 = sbr.rel (0) target = $region29
  $region28: #{bestrq_forward.1} parent=0 // pred_region
    _
  $region29: #{bestrq_forward.1} parent=0 // pred_fallthru
    _
  // Predicated region
  $region30: #{bestrq_forward.1} parent=0 // pred_check
    _
  $region31: #{bestrq_forward.1} parent=0 // pred_check_branch
    %38 = sbr.rel (0) target = $region33
  $region32: #{bestrq_forward.1} parent=0 // pred_region
    _
  $region33: #{bestrq_forward.1} parent=0 // pred_fallthru
    _
  // Predicated region
  $region34: #{bestrq_forward.1} parent=0 // pred_check
    _
  $region35: #{bestrq_forward.1} parent=0 // pred_check_branch
    %40 = sbr.rel (0) target = $region37
  $region36: #{bestrq_forward.1} parent=0 // pred_region
    _
  $region37: #{bestrq_forward.1} parent=0 // pred_fallthru
    _
  // Predicated region
  $region38: #{bestrq_forward.1} parent=0 // pred_check
    _
  $region39: #{bestrq_forward.1} parent=0 // pred_check_branch
    %42 = sbr.rel (0) target = $region41
  $region40: #{bestrq_forward.1} parent=0 // pred_region
    _
  $region41: #{bestrq_forward.1} parent=0 // pred_fallthru
    _
  // Predicated region
  $region42: #{bestrq_forward.1} parent=0 // pred_check
    _
  $region43: #{bestrq_forward.1} parent=0 // pred_check_branch
    %44 = sbr.rel (0) target = $region45
  $region44: #{bestrq_forward.1} parent=0 // pred_region
    _
  $region45: #{bestrq_forward.1} parent=0 // pred_fallthru
    _
  // Predicated region
  $region46: #{bestrq_forward.1} parent=0 // pred_check
    _
  $region47: #{bestrq_forward.1} parent=0 // pred_check_branch
    %46 = sbr.rel (0) target = $region49
  $region48: #{bestrq_forward.1} parent=0 // pred_region
    _
  $region49: #{bestrq_forward.1} parent=0 // pred_fallthru
    _
  // Predicated region
  $region50: #{bestrq_forward.1} parent=0 // pred_check
    _
  $region51: #{bestrq_forward.1} parent=0 // pred_check_branch
    %48 = sbr.rel (0) target = $region53
  $region52: #{bestrq_forward.1} parent=0 // pred_region
    _
  $region53: #{bestrq_forward.1} parent=0 // pred_fallthru
    _
  // Predicated region
  $region54: #{bestrq_forward.1} parent=0 // pred_check
    _
  $region55: #{bestrq_forward.1} parent=0 // pred_check_branch
    %50 = sbr.rel (0) target = $region57
  $region56: #{bestrq_forward.1} parent=0 // pred_region
    _
  $region57: #{bestrq_forward.1} parent=0 // pred_fallthru
    _
  // Predicated region
  $region58: #{bestrq_forward.1} parent=0 // pred_check
    _
  $region59: #{bestrq_forward.1} parent=0 // pred_check_branch
    %52 = sbr.rel (0) target = $region61
  $region60: #{bestrq_forward.1} parent=0 // pred_region
    _
  $region61: #{bestrq_forward.1} parent=0 // pred_fallthru
    _
  %v54 = vld [vmem:[%s0] sm:$0xff]
  %v55 = vld [vmem:[%s0 + $0x8] sm:$0xff]
  %v56 = vld [vmem:[%s0 + $0x10] sm:$0xff]
  %v57 = vld [vmem:[%s0 + $0x18] sm:$0xff]
  %v58 = vld [vmem:[%s2] sm:$0xff]
  %v59 = vld [vmem:[%s2 + $0x8] sm:$0xff]
  %v60 = vld [vmem:[%s2 + $0x10] sm:$0xff]
  %v61 = vld [vmem:[%s2 + $0x18] sm:$0xff]
  %63 = vset.pattern.permute.xlu0 0
  %64 = vperm.xlu0 %63, %v58
  %v65 = vpop.permute.xlu0 %64
  %68 = vset.pattern.permute.xlu0 0
  %69 = vperm.xlu0 %68, %v59
  %v70 = vpop.permute.xlu0 %69
  %73 = vset.pattern.permute.xlu0 0
  %74 = vperm.xlu0 %73, %v60
  %v75 = vpop.permute.xlu0 %74
  %78 = vset.pattern.permute.xlu0 0
  %79 = vperm.xlu0 %78, %v61
  %v80 = vpop.permute.xlu0 %79
  %v82 = vsub.f32 %v54, %v65
  %v83 = vsub.f32 %v55, %v70
  %v84 = vsub.f32 %v56, %v75
  %v85 = vsub.f32 %v57, %v80
  %v86 = vld [vmem:[%s3] sm:$0xff]
  %v87 = vld [vmem:[%s3 + $0x8] sm:$0xff]
  %v88 = vld [vmem:[%s3 + $0x10] sm:$0xff]
  %v89 = vld [vmem:[%s3 + $0x18] sm:$0xff]
  %91 = vset.pattern.permute.xlu0 0
  %92 = vperm.xlu0 %91, %v86
  %v93 = vpop.permute.xlu0 %92
  %96 = vset.pattern.permute.xlu0 0
  %97 = vperm.xlu0 %96, %v87
  %v98 = vpop.permute.xlu0 %97
  %101 = vset.pattern.permute.xlu0 0
  %102 = vperm.xlu0 %101, %v88
  %v103 = vpop.permute.xlu0 %102
  %106 = vset.pattern.permute.xlu0 0
  %107 = vperm.xlu0 %106, %v89
  %v108 = vpop.permute.xlu0 %107
  %v110 = vmul.f32 %v82, %v93
  %v111 = vmul.f32 %v83, %v98
  %v112 = vmul.f32 %v84, %v103
  %v113 = vmul.f32 %v85, %v108
  %v114 = vld [vmem:[%s5] sm:$0xff]
  %v115 = vld [vmem:[%s5 + $0x8] sm:$0xff]
  %v116 = vld [vmem:[%s5 + $0x10] sm:$0xff]
  %v117 = vld [vmem:[%s5 + $0x18] sm:$0xff]
  %v118 = vld [vmem:[%s1] sm:$0xf]
  %vm119 = vcmask 31744
  %v121 = vsel %vm119, %v114, 0
  %v124 = vsel %vm119, %v115, 0
  %v127 = vsel %vm119, %v116, 0
  %v130 = vsel %vm119, %v117, 0
  %vm132 = vcmask 1043456
  %v134 = vsel %vm132, %v118, 0
  %136 = vmatprep.subr.mxu0 0.0
  %137 = vmatpush1.msra.mxu0 %v134
  %138 = vmatprep.subr.mxu0 0.0
  %139 = vmatpush1.msra.mxu0 0.0
  %140 = vmatprep.subr.mxu0 0.0
  %141 = vmatpush1.msra.mxu0 0.0
  %142 = vmatprep.subr.mxu0 0.0
  %143 = vmatpush1.msra.mxu0 0.0
  %144 = vmatprep.subr.mxu0 0.0
  %145 = vmatpush1.msra.mxu0 0.0
  %146 = vmatprep.subr.mxu0 0.0
  %147 = vmatpush1.msra.mxu0 0.0
  %148 = vmatprep.subr.mxu0 0.0
  %149 = vmatpush1.msra.mxu0 0.0
  %150 = vmatprep.subr.mxu0 0.0
  %151 = vmatpush1.msra.mxu0 0.0
  %152 = vmatprep.subr.mxu0 0.0
  %153 = vmatpush1.msra.mxu0 0.0
  %154 = vmatprep.subr.mxu0 0.0
  %155 = vmatpush1.msra.mxu0 0.0
  %156 = vmatprep.subr.mxu0 0.0
  %157 = vmatpush1.msra.mxu0 0.0
  %158 = vmatprep.subr.mxu0 0.0
  %159 = vmatpush1.msra.mxu0 0.0
  %160 = vmatprep.subr.mxu0 0.0
  %161 = vmatpush1.msra.mxu0 0.0
  %162 = vmatprep.subr.mxu0 0.0
  %163 = vmatpush1.msra.mxu0 0.0
  %164 = vmatprep.subr.mxu0 0.0
  %165 = vmatpush1.msra.mxu0 0.0
  %166 = vmatprep.subr.mxu0 0.0
  %167 = vmatpush1.msra.mxu0 0.0
  %168 = vmatprep.subr.mxu0 0.0
  %169 = vmatpush1.msra.mxu0 0.0
  %170 = vmatprep.subr.mxu0 0.0
  %171 = vmatpush1.msra.mxu0 0.0
  %172 = vmatprep.subr.mxu0 0.0
  %173 = vmatpush1.msra.mxu0 0.0
  %174 = vmatprep.subr.mxu0 0.0
  %175 = vmatpush1.msra.mxu0 0.0
  %176 = vmatprep.subr.mxu0 0.0
  %177 = vmatpush1.msra.mxu0 0.0
  %178 = vmatprep.subr.mxu0 0.0
  %179 = vmatpush1.msra.mxu0 0.0
  %180 = vmatprep.subr.mxu0 0.0
  %181 = vmatpush1.msra.mxu0 0.0
  %182 = vmatprep.subr.mxu0 0.0
  %183 = vmatpush1.msra.mxu0 0.0
  %184 = vmatprep.subr.mxu0 0.0
  %185 = vmatpush1.msra.mxu0 0.0
  %186 = vmatprep.subr.mxu0 0.0
  %187 = vmatpush1.msra.mxu0 0.0
  %188 = vmatprep.subr.mxu0 0.0
  %189 = vmatpush1.msra.mxu0 0.0
  %190 = vmatprep.subr.mxu0 0.0
  %191 = vmatpush1.msra.mxu0 0.0
  %192 = vmatprep.subr.mxu0 0.0
  %193 = vmatpush1.msra.mxu0 0.0
  %194 = vmatprep.subr.mxu0 0.0
  %195 = vmatpush1.msra.mxu0 0.0
  %196 = vmatprep.subr.mxu0 0.0
  %197 = vmatpush1.msra.mxu0 0.0
  %198 = vmatprep.subr.mxu0 0.0
  %199 = vmatpush1.msra.mxu0 0.0
  %200 = vmatprep.mubr.f32.mxu0 0.0
  %201 = vmatmul.mubr.f32.gmra.mrb[0].mxu0 %v121
  %v202 = vpop.f32.mrb[0].mxu0
  %v203 = vadd.f32 0.0, %v202
  %v204 = vpop.f32.mrb[0].mxu0
  %205 = vmatprep.mubr.f32.mxu0 0.0
  %206 = vmatmul.mubr.f32.gmra.mrb[0].mxu0 %v124
  %v207 = vpop.f32.mrb[0].mxu0
  %v208 = vadd.f32 0.0, %v207
  %v209 = vpop.f32.mrb[0].mxu0
  %210 = vmatprep.mubr.f32.mxu0 0.0
  %211 = vmatmul.mubr.f32.gmra.mrb[0].mxu0 %v127
  %v212 = vpop.f32.mrb[0].mxu0
  %v213 = vadd.f32 0.0, %v212
  %v214 = vpop.f32.mrb[0].mxu0
  %215 = vmatprep.mubr.f32.mxu0 0.0
  %216 = vmatmul.mubr.f32.gmra.mrb[0].mxu0 %v130
  %v217 = vpop.f32.mrb[0].mxu0
  %v218 = vadd.f32 0.0, %v217
  %v219 = vpop.f32.mrb[0].mxu0
  %220 = vdwg.mxu0
  %v221 = vld [vmem:[%s4] sm:$0xff]
  %v222 = vld [vmem:[%s4 + $0x8] sm:$0xff]
  %v223 = vld [vmem:[%s4 + $0x10] sm:$0xff]
  %v224 = vld [vmem:[%s4 + $0x18] sm:$0xff]
  %226 = vset.pattern.permute.xlu0 0
  %227 = vperm.xlu0 %226, %v221
  %v228 = vpop.permute.xlu0 %227
  %231 = vset.pattern.permute.xlu0 0
  %232 = vperm.xlu0 %231, %v222
  %v233 = vpop.permute.xlu0 %232
  %236 = vset.pattern.permute.xlu0 0
  %237 = vperm.xlu0 %236, %v223
  %v238 = vpop.permute.xlu0 %237
  %241 = vset.pattern.permute.xlu0 0
  %242 = vperm.xlu0 %241, %v224
  %v243 = vpop.permute.xlu0 %242
  %v245 = vsub.f32 %v228, %v110
  %v246 = vsub.f32 %v233, %v111
  %v247 = vsub.f32 %v238, %v112
  %v248 = vsub.f32 %v243, %v113
  %v249 = vmul.f32 %v203, %v245
  %v250 = vmul.f32 %v208, %v246
  %v251 = vmul.f32 %v213, %v247
  %v252 = vmul.f32 %v218, %v248
  %v253 = vadd.f32 %v110, %v249
  %v254 = vadd.f32 %v111, %v250
  %v255 = vadd.f32 %v112, %v251
  %v256 = vadd.f32 %v113, %v252
  %v257 = vadd.f32 %v110, %v111
  %v258 = vadd.f32 %v257, %v112
  %v259 = vadd.f32 %v258, %v113
  %v260 = vrot.slane %v259, 4
  %v261 = vadd.f32 %v259, %v260
  %v262 = vrot.slane %v261, 2
  %v263 = vadd.f32 %v261, %v262
  %v264 = vrot.slane %v263, 1
  %v265 = vadd.f32 %v263, %v264
  %v266 = vrcp.pop 32.0
  %v267 = vmul.f32 %v265, %v266
  %v268 = vsub.f32 %v110, %v267
  %v269 = vsub.f32 %v111, %v267
  %v270 = vsub.f32 %v112, %v267
  %v271 = vsub.f32 %v113, %v267
  %v272 = vmul.f32 %v268, %v268
  %v273 = vmul.f32 %v269, %v269
  %v274 = vmul.f32 %v270, %v270
  %v275 = vmul.f32 %v271, %v271
  %v276 = vadd.f32 %v272, %v273
  %v277 = vadd.f32 %v276, %v274
  %v278 = vadd.f32 %v277, %v275
  %v279 = vrot.slane %v278, 4
  %v280 = vadd.f32 %v278, %v279
  %v281 = vrot.slane %v280, 2
  %v282 = vadd.f32 %v280, %v281
  %v283 = vrot.slane %v282, 1
  %v284 = vadd.f32 %v282, %v283
  %v285 = vmul.f32 %v284, %v266
  %v286 = vadd.f32 %v285, 1e-05
  %v287 = vrsqrt.pop %v286
  %v288 = vmul.f32 %v268, %v287
  %v289 = vmul.f32 %v269, %v287
  %v290 = vmul.f32 %v270, %v287
  %v291 = vmul.f32 %v271, %v287
  %v292 = vld [vmem:[%s6] sm:$0xf]
  %v293 = vld [vmem:[%s6 + $0x4] sm:$0xf]
  %v294 = vld [vmem:[%s6 + $0x8] sm:$0xf]
  %v295 = vld [vmem:[%s6 + $0xc] sm:$0xf]
  %v296 = vpack.c.bf16 %v289, %v288
  %v297 = vpack.c.bf16 %v291, %v290
  %v302 = vunpack.c.l.b16 %v292
  %v303 = vunpack.c.l.b16 %v293
  %v304 = vunpack.c.l.b16 %v294
  %v305 = vunpack.c.l.b16 %v295
  %v306 = vpack.c.b16 %v303, %v302
  %v307 = vpack.c.b16 %v305, %v304
  %vm308 = vcmask 261120
  %v310 = vsel %vm308, %v306, 0
  %v313 = vsel %vm308, %v307, 0
  %315 = vmatprep.subr.bf16.mxu0 0
  %316 = vmatpush1.bf16.msra.mxu0 %v296
  %317 = vmatprep.subr.bf16.mxu0 0
  %318 = vmatpush1.bf16.msra.mxu0 %v297
  %319 = vmatprep.subr.bf16.mxu0 0
  %320 = vmatpush1.bf16.msra.mxu0 0
  %321 = vmatprep.subr.bf16.mxu0 0
  %322 = vmatpush1.bf16.msra.mxu0 0
  %323 = vmatprep.subr.bf16.mxu0 0
  %324 = vmatpush1.bf16.msra.mxu0 0
  %325 = vmatprep.subr.bf16.mxu0 0
  %326 = vmatpush1.bf16.msra.mxu0 0
  %327 = vmatprep.subr.bf16.mxu0 0
  %328 = vmatpush1.bf16.msra.mxu0 0
  %329 = vmatprep.subr.bf16.mxu0 0
  %330 = vmatpush1.bf16.msra.mxu0 0
  %331 = vmatprep.subr.bf16.mxu0 0
  %332 = vmatpush1.bf16.msra.mxu0 0
  %333 = vmatprep.subr.bf16.mxu0 0
  %334 = vmatpush1.bf16.msra.mxu0 0
  %335 = vmatprep.subr.bf16.mxu0 0
  %336 = vmatpush1.bf16.msra.mxu0 0
  %337 = vmatprep.subr.bf16.mxu0 0
  %338 = vmatpush1.bf16.msra.mxu0 0
  %339 = vmatprep.subr.bf16.mxu0 0
  %340 = vmatpush1.bf16.msra.mxu0 0
  %341 = vmatprep.subr.bf16.mxu0 0
  %342 = vmatpush1.bf16.msra.mxu0 0
  %343 = vmatprep.subr.bf16.mxu0 0
  %344 = vmatpush1.bf16.msra.mxu0 0
  %345 = vmatprep.subr.bf16.mxu0 0
  %346 = vmatpush1.bf16.msra.mxu0 0
  %347 = vmatprep.mubr.bf16.mxu0 0
  %348 = vmatmul.mubr.bf16.gmra.mrb[0].mxu0 %v310
  %v349 = vpop.f32.mrb[0].mxu0
  %v350 = vadd.f32 0.0, %v349
  %v351 = vpop.f32.mrb[0].mxu0
  %v352 = vpop.f32.mrb[0].mxu0
  %v353 = vadd.f32 0.0, %v352
  %v354 = vpop.f32.mrb[0].mxu0
  %355 = vmatprep.mubr.bf16.mxu0 0
  %356 = vmatmul.mubr.bf16.gmra.mrb[0].mxu0 %v313
  %v357 = vpop.f32.mrb[0].mxu0
  %v358 = vadd.f32 0.0, %v357
  %v359 = vpop.f32.mrb[0].mxu0
  %v360 = vpop.f32.mrb[0].mxu0
  %v361 = vadd.f32 0.0, %v360
  %v362 = vpop.f32.mrb[0].mxu0
  %363 = vdwg.mxu0
  %v364 = vpack.c.bf16 %v353, %v350
  %v365 = vpack.c.bf16 %v361, %v358
  %v366 = vld [vmem:[%s7] sm:$0xf]
  %v367 = vld [vmem:[%s7 + $0x4] sm:$0xf]
  %v368 = vld [vmem:[%s7 + $0x8] sm:$0xf]
  %v369 = vld [vmem:[%s7 + $0xc] sm:$0xf]
  %v370 = vld [vmem:[%s7 + $0x10] sm:$0xf]
  %v371 = vld [vmem:[%s7 + $0x14] sm:$0xf]
  %v372 = vld [vmem:[%s7 + $0x18] sm:$0xf]
  %v373 = vld [vmem:[%s7 + $0x1c] sm:$0xf]
  %v382 = vunpack.c.l.b16 %v366
  %v383 = vunpack.c.l.b16 %v367
  %v384 = vunpack.c.l.b16 %v368
  %v385 = vunpack.c.l.b16 %v369
  %v386 = vunpack.c.l.b16 %v370
  %v387 = vunpack.c.l.b16 %v371
  %v388 = vunpack.c.l.b16 %v372
  %v389 = vunpack.c.l.b16 %v373
  %v390 = vpack.c.b16 %v383, %v382
  %v391 = vpack.c.b16 %v385, %v384
  %v392 = vpack.c.b16 %v387, %v386
  %v393 = vpack.c.b16 %v389, %v388
  %vm394 = vcmask 130048
  %v396 = vsel %vm394, %v390, 0
  %v399 = vsel %vm394, %v391, 0
  %v402 = vsel %vm394, %v392, 0
  %v405 = vsel %vm394, %v393, 0
  %407 = vmatprep.subr.bf16.mxu0 0
  %408 = vmatpush1.bf16.msra.mxu0 %v364
  %409 = vmatprep.subr.bf16.mxu0 0
  %410 = vmatpush1.bf16.msra.mxu0 0
  %411 = vmatprep.subr.bf16.mxu0 0
  %412 = vmatpush1.bf16.msra.mxu0 0
  %413 = vmatprep.subr.bf16.mxu0 0
  %414 = vmatpush1.bf16.msra.mxu0 0
  %415 = vmatprep.subr.bf16.mxu0 0
  %416 = vmatpush1.bf16.msra.mxu0 0
  %417 = vmatprep.subr.bf16.mxu0 0
  %418 = vmatpush1.bf16.msra.mxu0 0
  %419 = vmatprep.subr.bf16.mxu0 0
  %420 = vmatpush1.bf16.msra.mxu0 0
  %421 = vmatprep.subr.bf16.mxu0 0
  %422 = vmatpush1.bf16.msra.mxu0 0
  %423 = vmatprep.subr.bf16.mxu0 0
  %424 = vmatpush1.bf16.msra.mxu0 0
  %425 = vmatprep.subr.bf16.mxu0 0
  %426 = vmatpush1.bf16.msra.mxu0 0
  %427 = vmatprep.subr.bf16.mxu0 0
  %428 = vmatpush1.bf16.msra.mxu0 0
  %429 = vmatprep.subr.bf16.mxu0 0
  %430 = vmatpush1.bf16.msra.mxu0 0
  %431 = vmatprep.subr.bf16.mxu0 0
  %432 = vmatpush1.bf16.msra.mxu0 0
  %433 = vmatprep.subr.bf16.mxu0 0
  %434 = vmatpush1.bf16.msra.mxu0 0
  %435 = vmatprep.subr.bf16.mxu0 0
  %436 = vmatpush1.bf16.msra.mxu0 0
  %437 = vmatprep.subr.bf16.mxu0 0
  %438 = vmatpush1.bf16.msra.mxu0 0
  %439 = vmatprep.mubr.bf16.mxu0 0
  %440 = vmatmul.mubr.bf16.gmra.mrb[0].mxu0 %v396
  %v441 = vpop.f32.mrb[0].mxu0
  %v442 = vadd.f32 0.0, %v441
  %v443 = vpop.f32.mrb[0].mxu0
  %v444 = vpop.f32.mrb[0].mxu0
  %v445 = vadd.f32 0.0, %v444
  %v446 = vpop.f32.mrb[0].mxu0
  %447 = vmatprep.mubr.bf16.mxu0 0
  %448 = vmatmul.mubr.bf16.gmra.mrb[0].mxu0 %v399
  %v449 = vpop.f32.mrb[0].mxu0
  %v450 = vadd.f32 0.0, %v449
  %v451 = vpop.f32.mrb[0].mxu0
  %v452 = vpop.f32.mrb[0].mxu0
  %v453 = vadd.f32 0.0, %v452
  %v454 = vpop.f32.mrb[0].mxu0
  %455 = vmatprep.mubr.bf16.mxu0 0
  %456 = vmatmul.mubr.bf16.gmra.mrb[0].mxu0 %v402
  %v457 = vpop.f32.mrb[0].mxu0
  %v458 = vadd.f32 0.0, %v457
  %v459 = vpop.f32.mrb[0].mxu0
  %v460 = vpop.f32.mrb[0].mxu0
  %v461 = vadd.f32 0.0, %v460
  %v462 = vpop.f32.mrb[0].mxu0
  %463 = vmatprep.mubr.bf16.mxu0 0
  %464 = vmatmul.mubr.bf16.gmra.mrb[0].mxu0 %v405
  %v465 = vpop.f32.mrb[0].mxu0
  %v466 = vadd.f32 0.0, %v465
  %v467 = vpop.f32.mrb[0].mxu0
  %v468 = vpop.f32.mrb[0].mxu0
  %v469 = vadd.f32 0.0, %v468
  %v470 = vpop.f32.mrb[0].mxu0
  %471 = vdwg.mxu0
  %v472 = vld [vmem:[%s8] sm:$0xff]
  %v473 = vld [vmem:[%s8 + $0x8] sm:$0xff]
  %v474 = vld [vmem:[%s8 + $0x10] sm:$0xff]
  %v475 = vld [vmem:[%s8 + $0x18] sm:$0xff]
  %v476 = vld [vmem:[%s8 + $0x20] sm:$0xff]
  %v477 = vld [vmem:[%s8 + $0x28] sm:$0xff]
  %v478 = vld [vmem:[%s8 + $0x30] sm:$0xff]
  %v479 = vld [vmem:[%s8 + $0x38] sm:$0xff]
  %481 = vset.pattern.permute.xlu0 0
  %482 = vperm.xlu0 %481, %v472
  %v483 = vpop.permute.xlu0 %482
  %486 = vset.pattern.permute.xlu0 0
  %487 = vperm.xlu0 %486, %v473
  %v488 = vpop.permute.xlu0 %487
  %491 = vset.pattern.permute.xlu0 0
  %492 = vperm.xlu0 %491, %v474
  %v493 = vpop.permute.xlu0 %492
  %496 = vset.pattern.permute.xlu0 0
  %497 = vperm.xlu0 %496, %v475
  %v498 = vpop.permute.xlu0 %497
  %501 = vset.pattern.permute.xlu0 0
  %502 = vperm.xlu0 %501, %v476
  %v503 = vpop.permute.xlu0 %502
  %506 = vset.pattern.permute.xlu0 0
  %507 = vperm.xlu0 %506, %v477
  %v508 = vpop.permute.xlu0 %507
  %511 = vset.pattern.permute.xlu0 0
  %512 = vperm.xlu0 %511, %v478
  %v513 = vpop.permute.xlu0 %512
  %516 = vset.pattern.permute.xlu0 0
  %517 = vperm.xlu0 %516, %v479
  %v518 = vpop.permute.xlu0 %517
  %v520 = vsub.f32 %v442, %v483
  %v521 = vsub.f32 %v445, %v488
  %v522 = vsub.f32 %v450, %v493
  %v523 = vsub.f32 %v453, %v498
  %v524 = vsub.f32 %v458, %v503
  %v525 = vsub.f32 %v461, %v508
  %v526 = vsub.f32 %v466, %v513
  %v527 = vsub.f32 %v469, %v518
  %v528 = vlaneseq
  %v529 = vshrl.u32 %v528, 7
  %v530 = vadd.s32 %v529, 8
  %v531 = vadd.s32 %v529, 16
  %v532 = vadd.s32 %v529, 24
  %v533 = vadd.s32 %v529, 32
  %v534 = vadd.s32 %v529, 40
  %v535 = vadd.s32 %v529, 48
  %v536 = vadd.s32 %v529, 56
  %v537 = vmax.f32 %v520, %v524
  %v538 = vmax.f32 %v521, %v525
  %v539 = vmax.f32 %v522, %v526
  %v540 = vmax.f32 %v523, %v527
  %v541 = vmax.f32 %v537, %v538
  %v542 = vmax.f32 %v539, %v540
  %v543 = vmax.f32 %v541, %v542
  %v544 = vrot.slane %v543, 4
  %v545 = vmax.f32 %v543, %v544
  %v546 = vrot.slane %v545, 2
  %v547 = vmax.f32 %v545, %v546
  %v548 = vrot.slane %v547, 1
  %v549 = vmax.f32 %v547, %v548
  %vm550 = vcmp.ge.f32.partialorder %v520, %v549
  %vm551 = vcmp.ge.f32.partialorder %v521, %v549
  %vm552 = vcmp.ge.f32.partialorder %v522, %v549
  %vm553 = vcmp.ge.f32.partialorder %v523, %v549
  %vm554 = vcmp.ge.f32.partialorder %v524, %v549
  %vm555 = vcmp.ge.f32.partialorder %v525, %v549
  %vm556 = vcmp.ge.f32.partialorder %v526, %v549
  %vm557 = vcmp.ge.f32.partialorder %v527, %v549
  %v558 = vsel %vm550, %v529, 63
  %v559 = vsel %vm551, %v530, 63
  %v560 = vsel %vm552, %v531, 63
  %v561 = vsel %vm553, %v532, 63
  %v562 = vsel %vm554, %v533, 63
  %v563 = vsel %vm555, %v534, 63
  %v564 = vsel %vm556, %v535, 63
  %v565 = vsel %vm557, %v536, 63
  %vm566 = vcmp.lt.s32.totalorder %v558, %v562
  %v567 = vsel %vm566, %v558, %v562
  %vm568 = vcmp.lt.s32.totalorder %v559, %v563
  %v569 = vsel %vm568, %v559, %v563
  %vm570 = vcmp.lt.s32.totalorder %v560, %v564
  %v571 = vsel %vm570, %v560, %v564
  %vm572 = vcmp.lt.s32.totalorder %v561, %v565
  %v573 = vsel %vm572, %v561, %v565
  %vm574 = vcmp.lt.s32.totalorder %v567, %v569
  %v575 = vsel %vm574, %v567, %v569
  %vm576 = vcmp.lt.s32.totalorder %v571, %v573
  %v577 = vsel %vm576, %v571, %v573
  %vm578 = vcmp.lt.s32.totalorder %v575, %v577
  %v579 = vsel %vm578, %v575, %v577
  %v580 = vrot.slane %v579, 4
  %vm581 = vcmp.lt.s32.totalorder %v579, %v580
  %v582 = vsel %vm581, %v579, %v580
  %v583 = vrot.slane %v582, 2
  %vm584 = vcmp.lt.s32.totalorder %v582, %v583
  %v585 = vsel %vm584, %v582, %v583
  %v586 = vrot.slane %v585, 1
  %vm587 = vcmp.lt.s32.totalorder %v585, %v586
  %v588 = vsel %vm587, %v585, %v586
  %589 = vst [vmem:[%s15] sm:$0x1] %v588
  %v590 = vld [vmem:[%s7 + $0x20] sm:$0xf]
  %v591 = vld [vmem:[%s7 + $0x24] sm:$0xf]
  %v592 = vld [vmem:[%s7 + $0x28] sm:$0xf]
  %v593 = vld [vmem:[%s7 + $0x2c] sm:$0xf]
  %v594 = vld [vmem:[%s7 + $0x30] sm:$0xf]
  %v595 = vld [vmem:[%s7 + $0x34] sm:$0xf]
  %v596 = vld [vmem:[%s7 + $0x38] sm:$0xf]
  %v597 = vld [vmem:[%s7 + $0x3c] sm:$0xf]
  %v606 = vunpack.c.l.b16 %v590
  %v607 = vunpack.c.l.b16 %v591
  %v608 = vunpack.c.l.b16 %v592
  %v609 = vunpack.c.l.b16 %v593
  %v610 = vunpack.c.l.b16 %v594
  %v611 = vunpack.c.l.b16 %v595
  %v612 = vunpack.c.l.b16 %v596
  %v613 = vunpack.c.l.b16 %v597
  %v614 = vpack.c.b16 %v607, %v606
  %v615 = vpack.c.b16 %v609, %v608
  %v616 = vpack.c.b16 %v611, %v610
  %v617 = vpack.c.b16 %v613, %v612
  %v619 = vsel %vm394, %v614, 0
  %v622 = vsel %vm394, %v615, 0
  %v625 = vsel %vm394, %v616, 0
  %v628 = vsel %vm394, %v617, 0
  %630 = vmatprep.subr.bf16.mxu0 0
  %631 = vmatpush1.bf16.msra.mxu0 %v365
  %632 = vmatprep.subr.bf16.mxu0 0
  %633 = vmatpush1.bf16.msra.mxu0 0
  %634 = vmatprep.subr.bf16.mxu0 0
  %635 = vmatpush1.bf16.msra.mxu0 0
  %636 = vmatprep.subr.bf16.mxu0 0
  %637 = vmatpush1.bf16.msra.mxu0 0
  %638 = vmatprep.subr.bf16.mxu0 0
  %639 = vmatpush1.bf16.msra.mxu0 0
  %640 = vmatprep.subr.bf16.mxu0 0
  %641 = vmatpush1.bf16.msra.mxu0 0
  %642 = vmatprep.subr.bf16.mxu0 0
  %643 = vmatpush1.bf16.msra.mxu0 0
  %644 = vmatprep.subr.bf16.mxu0 0
  %645 = vmatpush1.bf16.msra.mxu0 0
  %646 = vmatprep.subr.bf16.mxu0 0
  %647 = vmatpush1.bf16.msra.mxu0 0
  %648 = vmatprep.subr.bf16.mxu0 0
  %649 = vmatpush1.bf16.msra.mxu0 0
  %650 = vmatprep.subr.bf16.mxu0 0
  %651 = vmatpush1.bf16.msra.mxu0 0
  %652 = vmatprep.subr.bf16.mxu0 0
  %653 = vmatpush1.bf16.msra.mxu0 0
  %654 = vmatprep.subr.bf16.mxu0 0
  %655 = vmatpush1.bf16.msra.mxu0 0
  %656 = vmatprep.subr.bf16.mxu0 0
  %657 = vmatpush1.bf16.msra.mxu0 0
  %658 = vmatprep.subr.bf16.mxu0 0
  %659 = vmatpush1.bf16.msra.mxu0 0
  %660 = vmatprep.subr.bf16.mxu0 0
  %661 = vmatpush1.bf16.msra.mxu0 0
  %662 = vmatprep.mubr.bf16.mxu0 0
  %663 = vmatmul.mubr.bf16.gmra.mrb[0].mxu0 %v619
  %v664 = vpop.f32.mrb[0].mxu0
  %v665 = vadd.f32 0.0, %v664
  %v666 = vpop.f32.mrb[0].mxu0
  %v667 = vpop.f32.mrb[0].mxu0
  %v668 = vadd.f32 0.0, %v667
  %v669 = vpop.f32.mrb[0].mxu0
  %670 = vmatprep.mubr.bf16.mxu0 0
  %671 = vmatmul.mubr.bf16.gmra.mrb[0].mxu0 %v622
  %v672 = vpop.f32.mrb[0].mxu0
  %v673 = vadd.f32 0.0, %v672
  %v674 = vpop.f32.mrb[0].mxu0
  %v675 = vpop.f32.mrb[0].mxu0
  %v676 = vadd.f32 0.0, %v675
  %v677 = vpop.f32.mrb[0].mxu0
  %678 = vmatprep.mubr.bf16.mxu0 0
  %679 = vmatmul.mubr.bf16.gmra.mrb[0].mxu0 %v625
  %v680 = vpop.f32.mrb[0].mxu0
  %v681 = vadd.f32 0.0, %v680
  %v682 = vpop.f32.mrb[0].mxu0
  %v683 = vpop.f32.mrb[0].mxu0
  %v684 = vadd.f32 0.0, %v683
  %v685 = vpop.f32.mrb[0].mxu0
  %686 = vmatprep.mubr.bf16.mxu0 0
  %687 = vmatmul.mubr.bf16.gmra.mrb[0].mxu0 %v628
  %v688 = vpop.f32.mrb[0].mxu0
  %v689 = vadd.f32 0.0, %v688
  %v690 = vpop.f32.mrb[0].mxu0
  %v691 = vpop.f32.mrb[0].mxu0
  %v692 = vadd.f32 0.0, %v691
  %v693 = vpop.f32.mrb[0].mxu0
  %694 = vdwg.mxu0
  %v695 = vld [vmem:[%s8 + $0x40] sm:$0xff]
  %v696 = vld [vmem:[%s8 + $0x48] sm:$0xff]
  %v697 = vld [vmem:[%s8 + $0x50] sm:$0xff]
  %v698 = vld [vmem:[%s8 + $0x58] sm:$0xff]
  %v699 = vld [vmem:[%s8 + $0x60] sm:$0xff]
  %v700 = vld [vmem:[%s8 + $0x68] sm:$0xff]
  %v701 = vld [vmem:[%s8 + $0x70] sm:$0xff]
  %v702 = vld [vmem:[%s8 + $0x78] sm:$0xff]
  %704 = vset.pattern.permute.xlu0 0
  %705 = vperm.xlu0 %704, %v695
  %v706 = vpop.permute.xlu0 %705
  %709 = vset.pattern.permute.xlu0 0
  %710 = vperm.xlu0 %709, %v696
  %v711 = vpop.permute.xlu0 %710
  %714 = vset.pattern.permute.xlu0 0
  %715 = vperm.xlu0 %714, %v697
  %v716 = vpop.permute.xlu0 %715
  %719 = vset.pattern.permute.xlu0 0
  %720 = vperm.xlu0 %719, %v698
  %v721 = vpop.permute.xlu0 %720
  %724 = vset.pattern.permute.xlu0 0
  %725 = vperm.xlu0 %724, %v699
  %v726 = vpop.permute.xlu0 %725
  %729 = vset.pattern.permute.xlu0 0
  %730 = vperm.xlu0 %729, %v700
  %v731 = vpop.permute.xlu0 %730
  %734 = vset.pattern.permute.xlu0 0
  %735 = vperm.xlu0 %734, %v701
  %v736 = vpop.permute.xlu0 %735
  %739 = vset.pattern.permute.xlu0 0
  %740 = vperm.xlu0 %739, %v702
  %v741 = vpop.permute.xlu0 %740
  %v743 = vsub.f32 %v665, %v706
  %v744 = vsub.f32 %v668, %v711
  %v745 = vsub.f32 %v673, %v716
  %v746 = vsub.f32 %v676, %v721
  %v747 = vsub.f32 %v681, %v726
  %v748 = vsub.f32 %v684, %v731
  %v749 = vsub.f32 %v689, %v736
  %v750 = vsub.f32 %v692, %v741
  %v751 = vmax.f32 %v743, %v747
  %v752 = vmax.f32 %v744, %v748
  %v753 = vmax.f32 %v745, %v749
  %v754 = vmax.f32 %v746, %v750
  %v755 = vmax.f32 %v751, %v752
  %v756 = vmax.f32 %v753, %v754
  %v757 = vmax.f32 %v755, %v756
  %v758 = vrot.slane %v757, 4
  %v759 = vmax.f32 %v757, %v758
  %v760 = vrot.slane %v759, 2
  %v761 = vmax.f32 %v759, %v760
  %v762 = vrot.slane %v761, 1
  %v763 = vmax.f32 %v761, %v762
  %vm764 = vcmp.ge.f32.partialorder %v743, %v763
  %vm765 = vcmp.ge.f32.partialorder %v744, %v763
  %vm766 = vcmp.ge.f32.partialorder %v745, %v763
  %vm767 = vcmp.ge.f32.partialorder %v746, %v763
  %vm768 = vcmp.ge.f32.partialorder %v747, %v763
  %vm769 = vcmp.ge.f32.partialorder %v748, %v763
  %vm770 = vcmp.ge.f32.partialorder %v749, %v763
  %vm771 = vcmp.ge.f32.partialorder %v750, %v763
  %v772 = vsel %vm764, %v529, 63
  %v773 = vsel %vm765, %v530, 63
  %v774 = vsel %vm766, %v531, 63
  %v775 = vsel %vm767, %v532, 63
  %v776 = vsel %vm768, %v533, 63
  %v777 = vsel %vm769, %v534, 63
  %v778 = vsel %vm770, %v535, 63
  %v779 = vsel %vm771, %v536, 63
  %vm780 = vcmp.lt.s32.totalorder %v772, %v776
  %v781 = vsel %vm780, %v772, %v776
  %vm782 = vcmp.lt.s32.totalorder %v773, %v777
  %v783 = vsel %vm782, %v773, %v777
  %vm784 = vcmp.lt.s32.totalorder %v774, %v778
  %v785 = vsel %vm784, %v774, %v778
  %vm786 = vcmp.lt.s32.totalorder %v775, %v779
  %v787 = vsel %vm786, %v775, %v779
  %vm788 = vcmp.lt.s32.totalorder %v781, %v783
  %v789 = vsel %vm788, %v781, %v783
  %vm790 = vcmp.lt.s32.totalorder %v785, %v787
  %v791 = vsel %vm790, %v785, %v787
  %vm792 = vcmp.lt.s32.totalorder %v789, %v791
  %v793 = vsel %vm792, %v789, %v791
  %v794 = vrot.slane %v793, 4
  %vm795 = vcmp.lt.s32.totalorder %v793, %v794
  %v796 = vsel %vm795, %v793, %v794
  %v797 = vrot.slane %v796, 2
  %vm798 = vcmp.lt.s32.totalorder %v796, %v797
  %v799 = vsel %vm798, %v796, %v797
  %v800 = vrot.slane %v799, 1
  %vm801 = vcmp.lt.s32.totalorder %v799, %v800
  %v802 = vsel %vm801, %v799, %v800
  %803 = vst [vmem:[%s15 + $0x1] sm:$0x1] %v802
  %v804 = vld [vmem:[%s9] sm:$0xf]
  %v805 = vld [vmem:[%s9 + $0x4] sm:$0xf]
  %v806 = vld [vmem:[%s9 + $0x8] sm:$0xf]
  %v807 = vld [vmem:[%s9 + $0xc] sm:$0xf]
  %v808 = vld [vmem:[%s9 + $0x10] sm:$0xf]
  %v809 = vld [vmem:[%s9 + $0x14] sm:$0xf]
  %v810 = vld [vmem:[%s9 + $0x18] sm:$0xf]
  %v811 = vld [vmem:[%s9 + $0x1c] sm:$0xf]
  %v812 = vpack.c.bf16 %v254, %v253
  %v813 = vpack.c.bf16 %v256, %v255
  %v814 = vld [vmem:[%s10] sm:$0xff]
  %v815 = vld [vmem:[%s10 + $0x8] sm:$0xff]
  %v816 = vld [vmem:[%s10 + $0x10] sm:$0xff]
  %v817 = vld [vmem:[%s10 + $0x18] sm:$0xff]
  %v818 = vld [vmem:[%s10 + $0x20] sm:$0xff]
  %v819 = vld [vmem:[%s10 + $0x28] sm:$0xff]
  %v820 = vld [vmem:[%s10 + $0x30] sm:$0xff]
  %v821 = vld [vmem:[%s10 + $0x38] sm:$0xff]
  %823 = vset.pattern.permute.xlu0 0
  %824 = vperm.xlu0 %823, %v814
  %v825 = vpop.permute.xlu0 %824
  %828 = vset.pattern.permute.xlu0 0
  %829 = vperm.xlu0 %828, %v815
  %v830 = vpop.permute.xlu0 %829
  %833 = vset.pattern.permute.xlu0 0
  %834 = vperm.xlu0 %833, %v816
  %v835 = vpop.permute.xlu0 %834
  %838 = vset.pattern.permute.xlu0 0
  %839 = vperm.xlu0 %838, %v817
  %v840 = vpop.permute.xlu0 %839
  %843 = vset.pattern.permute.xlu0 0
  %844 = vperm.xlu0 %843, %v818
  %v845 = vpop.permute.xlu0 %844
  %848 = vset.pattern.permute.xlu0 0
  %849 = vperm.xlu0 %848, %v819
  %v850 = vpop.permute.xlu0 %849
  %853 = vset.pattern.permute.xlu0 0
  %854 = vperm.xlu0 %853, %v820
  %v855 = vpop.permute.xlu0 %854
  %858 = vset.pattern.permute.xlu0 0
  %859 = vperm.xlu0 %858, %v821
  %v860 = vpop.permute.xlu0 %859
  %v870 = vunpack.c.l.b16 %v804
  %v871 = vunpack.c.l.b16 %v805
  %v872 = vunpack.c.l.b16 %v806
  %v873 = vunpack.c.l.b16 %v807
  %v874 = vunpack.c.l.b16 %v808
  %v875 = vunpack.c.l.b16 %v809
  %v876 = vunpack.c.l.b16 %v810
  %v877 = vunpack.c.l.b16 %v811
  %v878 = vpack.c.b16 %v871, %v870
  %v879 = vpack.c.b16 %v873, %v872
  %v880 = vpack.c.b16 %v875, %v874
  %v881 = vpack.c.b16 %v877, %v876
  %v883 = vsel %vm308, %v878, 0
  %v886 = vsel %vm308, %v879, 0
  %v889 = vsel %vm308, %v880, 0
  %v892 = vsel %vm308, %v881, 0
  %894 = vmatprep.subr.bf16.mxu0 0
  %895 = vmatpush1.bf16.msra.mxu0 %v812
  %896 = vmatprep.subr.bf16.mxu0 0
  %897 = vmatpush1.bf16.msra.mxu0 %v813
  %898 = vmatprep.subr.bf16.mxu0 0
  %899 = vmatpush1.bf16.msra.mxu0 0
  %900 = vmatprep.subr.bf16.mxu0 0
  %901 = vmatpush1.bf16.msra.mxu0 0
  %902 = vmatprep.subr.bf16.mxu0 0
  %903 = vmatpush1.bf16.msra.mxu0 0
  %904 = vmatprep.subr.bf16.mxu0 0
  %905 = vmatpush1.bf16.msra.mxu0 0
  %906 = vmatprep.subr.bf16.mxu0 0
  %907 = vmatpush1.bf16.msra.mxu0 0
  %908 = vmatprep.subr.bf16.mxu0 0
  %909 = vmatpush1.bf16.msra.mxu0 0
  %910 = vmatprep.subr.bf16.mxu0 0
  %911 = vmatpush1.bf16.msra.mxu0 0
  %912 = vmatprep.subr.bf16.mxu0 0
  %913 = vmatpush1.bf16.msra.mxu0 0
  %914 = vmatprep.subr.bf16.mxu0 0
  %915 = vmatpush1.bf16.msra.mxu0 0
  %916 = vmatprep.subr.bf16.mxu0 0
  %917 = vmatpush1.bf16.msra.mxu0 0
  %918 = vmatprep.subr.bf16.mxu0 0
  %919 = vmatpush1.bf16.msra.mxu0 0
  %920 = vmatprep.subr.bf16.mxu0 0
  %921 = vmatpush1.bf16.msra.mxu0 0
  %922 = vmatprep.subr.bf16.mxu0 0
  %923 = vmatpush1.bf16.msra.mxu0 0
  %924 = vmatprep.subr.bf16.mxu0 0
  %925 = vmatpush1.bf16.msra.mxu0 0
  %926 = vmatprep.mubr.bf16.mxu0 0
  %927 = vmatmul.mubr.bf16.gmra.mrb[0].mxu0 %v883
  %v928 = vpop.f32.mrb[0].mxu0
  %v929 = vadd.f32 %v825, %v928
  %v930 = vpop.f32.mrb[0].mxu0
  %v931 = vpop.f32.mrb[0].mxu0
  %v932 = vadd.f32 %v830, %v931
  %v933 = vpop.f32.mrb[0].mxu0
  %934 = vmatprep.mubr.bf16.mxu0 0
  %935 = vmatmul.mubr.bf16.gmra.mrb[0].mxu0 %v886
  %v936 = vpop.f32.mrb[0].mxu0
  %v937 = vadd.f32 %v835, %v936
  %v938 = vpop.f32.mrb[0].mxu0
  %v939 = vpop.f32.mrb[0].mxu0
  %v940 = vadd.f32 %v840, %v939
  %v941 = vpop.f32.mrb[0].mxu0
  %942 = vmatprep.mubr.bf16.mxu0 0
  %943 = vmatmul.mubr.bf16.gmra.mrb[0].mxu0 %v889
  %v944 = vpop.f32.mrb[0].mxu0
  %v945 = vadd.f32 %v845, %v944
  %v946 = vpop.f32.mrb[0].mxu0
  %v947 = vpop.f32.mrb[0].mxu0
  %v948 = vadd.f32 %v850, %v947
  %v949 = vpop.f32.mrb[0].mxu0
  %950 = vmatprep.mubr.bf16.mxu0 0
  %951 = vmatmul.mubr.bf16.gmra.mrb[0].mxu0 %v892
  %v952 = vpop.f32.mrb[0].mxu0
  %v953 = vadd.f32 %v855, %v952
  %v954 = vpop.f32.mrb[0].mxu0
  %v955 = vpop.f32.mrb[0].mxu0
  %v956 = vadd.f32 %v860, %v955
  %v957 = vpop.f32.mrb[0].mxu0
  %958 = vdwg.mxu0
  %v959 = vmax.f32 %v929, 0.0
  %v960 = vmax.f32 %v932, 0.0
  %v961 = vmax.f32 %v937, 0.0
  %v962 = vmax.f32 %v940, 0.0
  %v963 = vmax.f32 %v945, 0.0
  %v964 = vmax.f32 %v948, 0.0
  %v965 = vmax.f32 %v953, 0.0
  %v966 = vmax.f32 %v956, 0.0
  %v967 = vld [vmem:[%s11] sm:$0xf]
  %v968 = vld [vmem:[%s11 + $0x4] sm:$0xf]
  %v969 = vld [vmem:[%s11 + $0x8] sm:$0xf]
  %v970 = vld [vmem:[%s11 + $0xc] sm:$0xf]
  %v971 = vpack.c.bf16 %v960, %v959
  %v972 = vpack.c.bf16 %v962, %v961
  %v973 = vpack.c.bf16 %v964, %v963
  %v974 = vpack.c.bf16 %v966, %v965
  %v975 = vld [vmem:[%s12] sm:$0xff]
  %v976 = vld [vmem:[%s12 + $0x8] sm:$0xff]
  %v977 = vld [vmem:[%s12 + $0x10] sm:$0xff]
  %v978 = vld [vmem:[%s12 + $0x18] sm:$0xff]
  %980 = vset.pattern.permute.xlu0 0
  %981 = vperm.xlu0 %980, %v975
  %v982 = vpop.permute.xlu0 %981
  %985 = vset.pattern.permute.xlu0 0
  %986 = vperm.xlu0 %985, %v976
  %v987 = vpop.permute.xlu0 %986
  %990 = vset.pattern.permute.xlu0 0
  %991 = vperm.xlu0 %990, %v977
  %v992 = vpop.permute.xlu0 %991
  %995 = vset.pattern.permute.xlu0 0
  %996 = vperm.xlu0 %995, %v978
  %v997 = vpop.permute.xlu0 %996
  %v1003 = vunpack.c.l.b16 %v967
  %v1004 = vunpack.c.l.b16 %v968
  %v1005 = vunpack.c.l.b16 %v969
  %v1006 = vunpack.c.l.b16 %v970
  %v1007 = vpack.c.b16 %v1004, %v1003
  %v1008 = vpack.c.b16 %v1006, %v1005
  %vm1009 = vcmask 523264
  %v1011 = vsel %vm1009, %v1007, 0
  %v1014 = vsel %vm1009, %v1008, 0
  %1016 = vmatprep.subr.bf16.mxu0 0
  %1017 = vmatpush1.bf16.msra.mxu0 %v971
  %1018 = vmatprep.subr.bf16.mxu0 0
  %1019 = vmatpush1.bf16.msra.mxu0 %v972
  %1020 = vmatprep.subr.bf16.mxu0 0
  %1021 = vmatpush1.bf16.msra.mxu0 %v973
  %1022 = vmatprep.subr.bf16.mxu0 0
  %1023 = vmatpush1.bf16.msra.mxu0 %v974
  %1024 = vmatprep.subr.bf16.mxu0 0
  %1025 = vmatpush1.bf16.msra.mxu0 0
  %1026 = vmatprep.subr.bf16.mxu0 0
  %1027 = vmatpush1.bf16.msra.mxu0 0
  %1028 = vmatprep.subr.bf16.mxu0 0
  %1029 = vmatpush1.bf16.msra.mxu0 0
  %1030 = vmatprep.subr.bf16.mxu0 0
  %1031 = vmatpush1.bf16.msra.mxu0 0
  %1032 = vmatprep.subr.bf16.mxu0 0
  %1033 = vmatpush1.bf16.msra.mxu0 0
  %1034 = vmatprep.subr.bf16.mxu0 0
  %1035 = vmatpush1.bf16.msra.mxu0 0
  %1036 = vmatprep.subr.bf16.mxu0 0
  %1037 = vmatpush1.bf16.msra.mxu0 0
  %1038 = vmatprep.subr.bf16.mxu0 0
  %1039 = vmatpush1.bf16.msra.mxu0 0
  %1040 = vmatprep.subr.bf16.mxu0 0
  %1041 = vmatpush1.bf16.msra.mxu0 0
  %1042 = vmatprep.subr.bf16.mxu0 0
  %1043 = vmatpush1.bf16.msra.mxu0 0
  %1044 = vmatprep.subr.bf16.mxu0 0
  %1045 = vmatpush1.bf16.msra.mxu0 0
  %1046 = vmatprep.subr.bf16.mxu0 0
  %1047 = vmatpush1.bf16.msra.mxu0 0
  %1048 = vmatprep.mubr.bf16.mxu0 0
  %1049 = vmatmul.mubr.bf16.gmra.mrb[0].mxu0 %v1011
  %v1050 = vpop.f32.mrb[0].mxu0
  %v1051 = vadd.f32 %v982, %v1050
  %v1052 = vpop.f32.mrb[0].mxu0
  %v1053 = vpop.f32.mrb[0].mxu0
  %v1054 = vadd.f32 %v987, %v1053
  %v1055 = vpop.f32.mrb[0].mxu0
  %1056 = vmatprep.mubr.bf16.mxu0 0
  %1057 = vmatmul.mubr.bf16.gmra.mrb[0].mxu0 %v1014
  %v1058 = vpop.f32.mrb[0].mxu0
  %v1059 = vadd.f32 %v992, %v1058
  %v1060 = vpop.f32.mrb[0].mxu0
  %v1061 = vpop.f32.mrb[0].mxu0
  %v1062 = vadd.f32 %v997, %v1061
  %v1063 = vpop.f32.mrb[0].mxu0
  %1064 = vdwg.mxu0
  %v1065 = vpack.c.bf16 %v1054, %v1051
  %v1066 = vpack.c.bf16 %v1062, %v1059
  %v1067 = vld [vmem:[%s13] sm:$0xf]
  %v1068 = vld [vmem:[%s13 + $0x4] sm:$0xf]
  %v1069 = vld [vmem:[%s13 + $0x8] sm:$0xf]
  %v1070 = vld [vmem:[%s13 + $0xc] sm:$0xf]
  %v1071 = vld [vmem:[%s13 + $0x10] sm:$0xf]
  %v1072 = vld [vmem:[%s13 + $0x14] sm:$0xf]
  %v1073 = vld [vmem:[%s13 + $0x18] sm:$0xf]
  %v1074 = vld [vmem:[%s13 + $0x1c] sm:$0xf]
  %v1075 = vld [vmem:[%s14] sm:$0xff]
  %v1076 = vld [vmem:[%s14 + $0x8] sm:$0xff]
  %v1077 = vld [vmem:[%s14 + $0x10] sm:$0xff]
  %v1078 = vld [vmem:[%s14 + $0x18] sm:$0xff]
  %v1079 = vld [vmem:[%s14 + $0x20] sm:$0xff]
  %v1080 = vld [vmem:[%s14 + $0x28] sm:$0xff]
  %v1081 = vld [vmem:[%s14 + $0x30] sm:$0xff]
  %v1082 = vld [vmem:[%s14 + $0x38] sm:$0xff]
  %1084 = vset.pattern.permute.xlu0 0
  %1085 = vperm.xlu0 %1084, %v1075
  %v1086 = vpop.permute.xlu0 %1085
  %1089 = vset.pattern.permute.xlu0 0
  %1090 = vperm.xlu0 %1089, %v1076
  %v1091 = vpop.permute.xlu0 %1090
  %1094 = vset.pattern.permute.xlu0 0
  %1095 = vperm.xlu0 %1094, %v1077
  %v1096 = vpop.permute.xlu0 %1095
  %1099 = vset.pattern.permute.xlu0 0
  %1100 = vperm.xlu0 %1099, %v1078
  %v1101 = vpop.permute.xlu0 %1100
  %1104 = vset.pattern.permute.xlu0 0
  %1105 = vperm.xlu0 %1104, %v1079
  %v1106 = vpop.permute.xlu0 %1105
  %1109 = vset.pattern.permute.xlu0 0
  %1110 = vperm.xlu0 %1109, %v1080
  %v1111 = vpop.permute.xlu0 %1110
  %1114 = vset.pattern.permute.xlu0 0
  %1115 = vperm.xlu0 %1114, %v1081
  %v1116 = vpop.permute.xlu0 %1115
  %1119 = vset.pattern.permute.xlu0 0
  %1120 = vperm.xlu0 %1119, %v1082
  %v1121 = vpop.permute.xlu0 %1120
  %v1131 = vunpack.c.l.b16 %v1067
  %v1132 = vunpack.c.l.b16 %v1068
  %v1133 = vunpack.c.l.b16 %v1069
  %v1134 = vunpack.c.l.b16 %v1070
  %v1135 = vunpack.c.l.b16 %v1071
  %v1136 = vunpack.c.l.b16 %v1072
  %v1137 = vunpack.c.l.b16 %v1073
  %v1138 = vunpack.c.l.b16 %v1074
  %v1139 = vpack.c.b16 %v1132, %v1131
  %v1140 = vpack.c.b16 %v1134, %v1133
  %v1141 = vpack.c.b16 %v1136, %v1135
  %v1142 = vpack.c.b16 %v1138, %v1137
  %v1144 = vsel %vm308, %v1139, 0
  %v1147 = vsel %vm308, %v1140, 0
  %v1150 = vsel %vm308, %v1141, 0
  %v1153 = vsel %vm308, %v1142, 0
  %1155 = vmatprep.subr.bf16.mxu0 0
  %1156 = vmatpush1.bf16.msra.mxu0 %v1065
  %1157 = vmatprep.subr.bf16.mxu0 0
  %1158 = vmatpush1.bf16.msra.mxu0 %v1066
  %1159 = vmatprep.subr.bf16.mxu0 0
  %1160 = vmatpush1.bf16.msra.mxu0 0
  %1161 = vmatprep.subr.bf16.mxu0 0
  %1162 = vmatpush1.bf16.msra.mxu0 0
  %1163 = vmatprep.subr.bf16.mxu0 0
  %1164 = vmatpush1.bf16.msra.mxu0 0
  %1165 = vmatprep.subr.bf16.mxu0 0
  %1166 = vmatpush1.bf16.msra.mxu0 0
  %1167 = vmatprep.subr.bf16.mxu0 0
  %1168 = vmatpush1.bf16.msra.mxu0 0
  %1169 = vmatprep.subr.bf16.mxu0 0
  %1170 = vmatpush1.bf16.msra.mxu0 0
  %1171 = vmatprep.subr.bf16.mxu0 0
  %1172 = vmatpush1.bf16.msra.mxu0 0
  %1173 = vmatprep.subr.bf16.mxu0 0
  %1174 = vmatpush1.bf16.msra.mxu0 0
  %1175 = vmatprep.subr.bf16.mxu0 0
  %1176 = vmatpush1.bf16.msra.mxu0 0
  %1177 = vmatprep.subr.bf16.mxu0 0
  %1178 = vmatpush1.bf16.msra.mxu0 0
  %1179 = vmatprep.subr.bf16.mxu0 0
  %1180 = vmatpush1.bf16.msra.mxu0 0
  %1181 = vmatprep.subr.bf16.mxu0 0
  %1182 = vmatpush1.bf16.msra.mxu0 0
  %1183 = vmatprep.subr.bf16.mxu0 0
  %1184 = vmatpush1.bf16.msra.mxu0 0
  %1185 = vmatprep.subr.bf16.mxu0 0
  %1186 = vmatpush1.bf16.msra.mxu0 0
  %1187 = vmatprep.mubr.bf16.mxu0 0
  %1188 = vmatmul.mubr.bf16.gmra.mrb[0].mxu0 %v1144
  %v1189 = vpop.f32.mrb[0].mxu0
  %v1190 = vadd.f32 %v1086, %v1189
  %v1191 = vpop.f32.mrb[0].mxu0
  %v1192 = vpop.f32.mrb[0].mxu0
  %v1193 = vadd.f32 %v1091, %v1192
  %v1194 = vpop.f32.mrb[0].mxu0
  %1195 = vmatprep.mubr.bf16.mxu0 0
  %1196 = vmatmul.mubr.bf16.gmra.mrb[0].mxu0 %v1147
  %v1197 = vpop.f32.mrb[0].mxu0
  %v1198 = vadd.f32 %v1096, %v1197
  %v1199 = vpop.f32.mrb[0].mxu0
  %v1200 = vpop.f32.mrb[0].mxu0
  %v1201 = vadd.f32 %v1101, %v1200
  %v1202 = vpop.f32.mrb[0].mxu0
  %1203 = vmatprep.mubr.bf16.mxu0 0
  %1204 = vmatmul.mubr.bf16.gmra.mrb[0].mxu0 %v1150
  %v1205 = vpop.f32.mrb[0].mxu0
  %v1206 = vadd.f32 %v1106, %v1205
  %v1207 = vpop.f32.mrb[0].mxu0
  %v1208 = vpop.f32.mrb[0].mxu0
  %v1209 = vadd.f32 %v1111, %v1208
  %v1210 = vpop.f32.mrb[0].mxu0
  %1211 = vmatprep.mubr.bf16.mxu0 0
  %1212 = vmatmul.mubr.bf16.gmra.mrb[0].mxu0 %v1153
  %v1213 = vpop.f32.mrb[0].mxu0
  %v1214 = vadd.f32 %v1116, %v1213
  %v1215 = vpop.f32.mrb[0].mxu0
  %v1216 = vpop.f32.mrb[0].mxu0
  %v1217 = vadd.f32 %v1121, %v1216
  %v1218 = vpop.f32.mrb[0].mxu0
  %1219 = vdwg.mxu0
  %v1220 = vld [vmem:[%s15] sm:$0x1]
  %v1221 = vmax.f32 %v1190, %v1206
  %v1222 = vmax.f32 %v1193, %v1209
  %v1223 = vmax.f32 %v1198, %v1214
  %v1224 = vmax.f32 %v1201, %v1217
  %v1225 = vmax.f32 %v1221, %v1222
  %v1226 = vmax.f32 %v1223, %v1224
  %v1227 = vmax.f32 %v1225, %v1226
  %v1228 = vrot.slane %v1227, 4
  %v1229 = vmax.f32 %v1227, %v1228
  %v1230 = vrot.slane %v1229, 2
  %v1231 = vmax.f32 %v1229, %v1230
  %v1232 = vrot.slane %v1231, 1
  %v1233 = vmax.f32 %v1231, %v1232
  %v1234 = vsub.f32 %v1190, %v1233
  %v1235 = vsub.f32 %v1193, %v1233
  %v1236 = vsub.f32 %v1198, %v1233
  %v1237 = vsub.f32 %v1201, %v1233
  %v1238 = vsub.f32 %v1206, %v1233
  %v1239 = vsub.f32 %v1209, %v1233
  %v1240 = vsub.f32 %v1214, %v1233
  %v1241 = vsub.f32 %v1217, %v1233
  %v1242 = vmul.f32 %v1234, 1.442695
  %v1243 = vpow.pop %v1242
  %v1244 = vmul.f32 %v1235, 1.442695
  %v1245 = vpow.pop %v1244
  %v1246 = vmul.f32 %v1236, 1.442695
  %v1247 = vpow.pop %v1246
  %v1248 = vmul.f32 %v1237, 1.442695
  %v1249 = vpow.pop %v1248
  %v1250 = vmul.f32 %v1238, 1.442695
  %v1251 = vpow.pop %v1250
  %v1252 = vmul.f32 %v1239, 1.442695
  %v1253 = vpow.pop %v1252
  %v1254 = vmul.f32 %v1240, 1.442695
  %v1255 = vpow.pop %v1254
  %v1256 = vmul.f32 %v1241, 1.442695
  %v1257 = vpow.pop %v1256
  %v1258 = vadd.f32 %v1243, %v1245
  %v1259 = vadd.f32 %v1258, %v1247
  %v1260 = vadd.f32 %v1259, %v1249
  %v1261 = vadd.f32 %v1260, %v1251
  %v1262 = vadd.f32 %v1261, %v1253
  %v1263 = vadd.f32 %v1262, %v1255
  %v1264 = vadd.f32 %v1263, %v1257
  %v1265 = vrot.slane %v1264, 4
  %v1266 = vadd.f32 %v1264, %v1265
  %v1267 = vrot.slane %v1266, 2
  %v1268 = vadd.f32 %v1266, %v1267
  %v1269 = vrot.slane %v1268, 1
  %v1270 = vadd.f32 %v1268, %v1269
  %v1271 = vlog2.pop %v1270
  %v1272 = vmul.f32 %v1271, 0.6931472
  %v1273 = vadd.f32 %v1233, %v1272
  %v1274 = vlaneseq
  %v1275 = vshrl.u32 %v1274, 7
  %v1276 = vsub.s32 0, %v1275
  %v1277 = vrot.slane %v1220, %v1276
  %vm1278 = vcmp.eq.s32.totalorder %v529, %v1277
  %vm1279 = vcmp.eq.s32.totalorder %v530, %v1277
  %vm1280 = vcmp.eq.s32.totalorder %v531, %v1277
  %vm1281 = vcmp.eq.s32.totalorder %v532, %v1277
  %vm1282 = vcmp.eq.s32.totalorder %v533, %v1277
  %vm1283 = vcmp.eq.s32.totalorder %v534, %v1277
  %vm1284 = vcmp.eq.s32.totalorder %v535, %v1277
  %vm1285 = vcmp.eq.s32.totalorder %v536, %v1277
  %v1286 = vsel %vm1278, %v1190, 0.0
  %v1287 = vsel %vm1279, %v1193, 0.0
  %v1288 = vsel %vm1280, %v1198, 0.0
  %v1289 = vsel %vm1281, %v1201, 0.0
  %v1290 = vsel %vm1282, %v1206, 0.0
  %v1291 = vsel %vm1283, %v1209, 0.0
  %v1292 = vsel %vm1284, %v1214, 0.0
  %v1293 = vsel %vm1285, %v1217, 0.0
  %v1294 = vadd.f32 %v1286, %v1287
  %v1295 = vadd.f32 %v1294, %v1288
  %v1296 = vadd.f32 %v1295, %v1289
  %v1297 = vadd.f32 %v1296, %v1290
  %v1298 = vadd.f32 %v1297, %v1291
  %v1299 = vadd.f32 %v1298, %v1292
  %v1300 = vadd.f32 %v1299, %v1293
  %v1301 = vrot.slane %v1300, 4
  %v1302 = vadd.f32 %v1300, %v1301
  %v1303 = vrot.slane %v1302, 2
  %v1304 = vadd.f32 %v1302, %v1303
  %v1305 = vrot.slane %v1304, 1
  %v1306 = vadd.f32 %v1304, %v1305
  %v1307 = vsub.f32 %v1273, %v1306
  %1308 = vst [vmem:[%s16] sm:$0x1] %v1307
  %vm1309 = vcmp.ge.f32.partialorder %v1190, %v1233
  %vm1310 = vcmp.ge.f32.partialorder %v1193, %v1233
  %vm1311 = vcmp.ge.f32.partialorder %v1198, %v1233
  %vm1312 = vcmp.ge.f32.partialorder %v1201, %v1233
  %vm1313 = vcmp.ge.f32.partialorder %v1206, %v1233
  %vm1314 = vcmp.ge.f32.partialorder %v1209, %v1233
  %vm1315 = vcmp.ge.f32.partialorder %v1214, %v1233
  %vm1316 = vcmp.ge.f32.partialorder %v1217, %v1233
  %v1317 = vsel %vm1309, %v529, 63
  %v1318 = vsel %vm1310, %v530, 63
  %v1319 = vsel %vm1311, %v531, 63
  %v1320 = vsel %vm1312, %v532, 63
  %v1321 = vsel %vm1313, %v533, 63
  %v1322 = vsel %vm1314, %v534, 63
  %v1323 = vsel %vm1315, %v535, 63
  %v1324 = vsel %vm1316, %v536, 63
  %vm1325 = vcmp.lt.s32.totalorder %v1317, %v1321
  %v1326 = vsel %vm1325, %v1317, %v1321
  %vm1327 = vcmp.lt.s32.totalorder %v1318, %v1322
  %v1328 = vsel %vm1327, %v1318, %v1322
  %vm1329 = vcmp.lt.s32.totalorder %v1319, %v1323
  %v1330 = vsel %vm1329, %v1319, %v1323
  %vm1331 = vcmp.lt.s32.totalorder %v1320, %v1324
  %v1332 = vsel %vm1331, %v1320, %v1324
  %vm1333 = vcmp.lt.s32.totalorder %v1326, %v1328
  %v1334 = vsel %vm1333, %v1326, %v1328
  %vm1335 = vcmp.lt.s32.totalorder %v1330, %v1332
  %v1336 = vsel %vm1335, %v1330, %v1332
  %vm1337 = vcmp.lt.s32.totalorder %v1334, %v1336
  %v1338 = vsel %vm1337, %v1334, %v1336
  %v1339 = vrot.slane %v1338, 4
  %vm1340 = vcmp.lt.s32.totalorder %v1338, %v1339
  %v1341 = vsel %vm1340, %v1338, %v1339
  %v1342 = vrot.slane %v1341, 2
  %vm1343 = vcmp.lt.s32.totalorder %v1341, %v1342
  %v1344 = vsel %vm1343, %v1341, %v1342
  %v1345 = vrot.slane %v1344, 1
  %vm1346 = vcmp.lt.s32.totalorder %v1344, %v1345
  %v1347 = vsel %vm1346, %v1344, %v1345
  %1348 = vst [vmem:[%s17] sm:$0x1] %v1347
  %v1349 = vld [vmem:[%s13 + $0x20] sm:$0xf]
  %v1350 = vld [vmem:[%s13 + $0x24] sm:$0xf]
  %v1351 = vld [vmem:[%s13 + $0x28] sm:$0xf]
  %v1352 = vld [vmem:[%s13 + $0x2c] sm:$0xf]
  %v1353 = vld [vmem:[%s13 + $0x30] sm:$0xf]
  %v1354 = vld [vmem:[%s13 + $0x34] sm:$0xf]
  %v1355 = vld [vmem:[%s13 + $0x38] sm:$0xf]
  %v1356 = vld [vmem:[%s13 + $0x3c] sm:$0xf]
  %v1357 = vld [vmem:[%s14 + $0x40] sm:$0xff]
  %v1358 = vld [vmem:[%s14 + $0x48] sm:$0xff]
  %v1359 = vld [vmem:[%s14 + $0x50] sm:$0xff]
  %v1360 = vld [vmem:[%s14 + $0x58] sm:$0xff]
  %v1361 = vld [vmem:[%s14 + $0x60] sm:$0xff]
  %v1362 = vld [vmem:[%s14 + $0x68] sm:$0xff]
  %v1363 = vld [vmem:[%s14 + $0x70] sm:$0xff]
  %v1364 = vld [vmem:[%s14 + $0x78] sm:$0xff]
  %1366 = vset.pattern.permute.xlu0 0
  %1367 = vperm.xlu0 %1366, %v1357
  %v1368 = vpop.permute.xlu0 %1367
  %1371 = vset.pattern.permute.xlu0 0
  %1372 = vperm.xlu0 %1371, %v1358
  %v1373 = vpop.permute.xlu0 %1372
  %1376 = vset.pattern.permute.xlu0 0
  %1377 = vperm.xlu0 %1376, %v1359
  %v1378 = vpop.permute.xlu0 %1377
  %1381 = vset.pattern.permute.xlu0 0
  %1382 = vperm.xlu0 %1381, %v1360
  %v1383 = vpop.permute.xlu0 %1382
  %1386 = vset.pattern.permute.xlu0 0
  %1387 = vperm.xlu0 %1386, %v1361
  %v1388 = vpop.permute.xlu0 %1387
  %1391 = vset.pattern.permute.xlu0 0
  %1392 = vperm.xlu0 %1391, %v1362
  %v1393 = vpop.permute.xlu0 %1392
  %1396 = vset.pattern.permute.xlu0 0
  %1397 = vperm.xlu0 %1396, %v1363
  %v1398 = vpop.permute.xlu0 %1397
  %1401 = vset.pattern.permute.xlu0 0
  %1402 = vperm.xlu0 %1401, %v1364
  %v1403 = vpop.permute.xlu0 %1402
  %v1413 = vunpack.c.l.b16 %v1349
  %v1414 = vunpack.c.l.b16 %v1350
  %v1415 = vunpack.c.l.b16 %v1351
  %v1416 = vunpack.c.l.b16 %v1352
  %v1417 = vunpack.c.l.b16 %v1353
  %v1418 = vunpack.c.l.b16 %v1354
  %v1419 = vunpack.c.l.b16 %v1355
  %v1420 = vunpack.c.l.b16 %v1356
  %v1421 = vpack.c.b16 %v1414, %v1413
  %v1422 = vpack.c.b16 %v1416, %v1415
  %v1423 = vpack.c.b16 %v1418, %v1417
  %v1424 = vpack.c.b16 %v1420, %v1419
  %v1426 = vsel %vm308, %v1421, 0
  %v1429 = vsel %vm308, %v1422, 0
  %v1432 = vsel %vm308, %v1423, 0
  %v1435 = vsel %vm308, %v1424, 0
  %1437 = vmatprep.subr.bf16.mxu0 0
  %1438 = vmatpush1.bf16.msra.mxu0 %v1065
  %1439 = vmatprep.subr.bf16.mxu0 0
  %1440 = vmatpush1.bf16.msra.mxu0 %v1066
  %1441 = vmatprep.subr.bf16.mxu0 0
  %1442 = vmatpush1.bf16.msra.mxu0 0
  %1443 = vmatprep.subr.bf16.mxu0 0
  %1444 = vmatpush1.bf16.msra.mxu0 0
  %1445 = vmatprep.subr.bf16.mxu0 0
  %1446 = vmatpush1.bf16.msra.mxu0 0
  %1447 = vmatprep.subr.bf16.mxu0 0
  %1448 = vmatpush1.bf16.msra.mxu0 0
  %1449 = vmatprep.subr.bf16.mxu0 0
  %1450 = vmatpush1.bf16.msra.mxu0 0
  %1451 = vmatprep.subr.bf16.mxu0 0
  %1452 = vmatpush1.bf16.msra.mxu0 0
  %1453 = vmatprep.subr.bf16.mxu0 0
  %1454 = vmatpush1.bf16.msra.mxu0 0
  %1455 = vmatprep.subr.bf16.mxu0 0
  %1456 = vmatpush1.bf16.msra.mxu0 0
  %1457 = vmatprep.subr.bf16.mxu0 0
  %1458 = vmatpush1.bf16.msra.mxu0 0
  %1459 = vmatprep.subr.bf16.mxu0 0
  %1460 = vmatpush1.bf16.msra.mxu0 0
  %1461 = vmatprep.subr.bf16.mxu0 0
  %1462 = vmatpush1.bf16.msra.mxu0 0
  %1463 = vmatprep.subr.bf16.mxu0 0
  %1464 = vmatpush1.bf16.msra.mxu0 0
  %1465 = vmatprep.subr.bf16.mxu0 0
  %1466 = vmatpush1.bf16.msra.mxu0 0
  %1467 = vmatprep.subr.bf16.mxu0 0
  %1468 = vmatpush1.bf16.msra.mxu0 0
  %1469 = vmatprep.mubr.bf16.mxu0 0
  %1470 = vmatmul.mubr.bf16.gmra.mrb[0].mxu0 %v1426
  %v1471 = vpop.f32.mrb[0].mxu0
  %v1472 = vadd.f32 %v1368, %v1471
  %v1473 = vpop.f32.mrb[0].mxu0
  %v1474 = vpop.f32.mrb[0].mxu0
  %v1475 = vadd.f32 %v1373, %v1474
  %v1476 = vpop.f32.mrb[0].mxu0
  %1477 = vmatprep.mubr.bf16.mxu0 0
  %1478 = vmatmul.mubr.bf16.gmra.mrb[0].mxu0 %v1429
  %v1479 = vpop.f32.mrb[0].mxu0
  %v1480 = vadd.f32 %v1378, %v1479
  %v1481 = vpop.f32.mrb[0].mxu0
  %v1482 = vpop.f32.mrb[0].mxu0
  %v1483 = vadd.f32 %v1383, %v1482
  %v1484 = vpop.f32.mrb[0].mxu0
  %1485 = vmatprep.mubr.bf16.mxu0 0
  %1486 = vmatmul.mubr.bf16.gmra.mrb[0].mxu0 %v1432
  %v1487 = vpop.f32.mrb[0].mxu0
  %v1488 = vadd.f32 %v1388, %v1487
  %v1489 = vpop.f32.mrb[0].mxu0
  %v1490 = vpop.f32.mrb[0].mxu0
  %v1491 = vadd.f32 %v1393, %v1490
  %v1492 = vpop.f32.mrb[0].mxu0
  %1493 = vmatprep.mubr.bf16.mxu0 0
  %1494 = vmatmul.mubr.bf16.gmra.mrb[0].mxu0 %v1435
  %v1495 = vpop.f32.mrb[0].mxu0
  %v1496 = vadd.f32 %v1398, %v1495
  %v1497 = vpop.f32.mrb[0].mxu0
  %v1498 = vpop.f32.mrb[0].mxu0
  %v1499 = vadd.f32 %v1403, %v1498
  %v1500 = vpop.f32.mrb[0].mxu0
  %1501 = vdwg.mxu0
  %v1502 = vld [vmem:[%s15 + $0x1] sm:$0x1]
  %v1503 = vmax.f32 %v1472, %v1488
  %v1504 = vmax.f32 %v1475, %v1491
  %v1505 = vmax.f32 %v1480, %v1496
  %v1506 = vmax.f32 %v1483, %v1499
  %v1507 = vmax.f32 %v1503, %v1504
  %v1508 = vmax.f32 %v1505, %v1506
  %v1509 = vmax.f32 %v1507, %v1508
  %v1510 = vrot.slane %v1509, 4
  %v1511 = vmax.f32 %v1509, %v1510
  %v1512 = vrot.slane %v1511, 2
  %v1513 = vmax.f32 %v1511, %v1512
  %v1514 = vrot.slane %v1513, 1
  %v1515 = vmax.f32 %v1513, %v1514
  %v1516 = vsub.f32 %v1472, %v1515
  %v1517 = vsub.f32 %v1475, %v1515
  %v1518 = vsub.f32 %v1480, %v1515
  %v1519 = vsub.f32 %v1483, %v1515
  %v1520 = vsub.f32 %v1488, %v1515
  %v1521 = vsub.f32 %v1491, %v1515
  %v1522 = vsub.f32 %v1496, %v1515
  %v1523 = vsub.f32 %v1499, %v1515
  %v1524 = vmul.f32 %v1516, 1.442695
  %v1525 = vpow.pop %v1524
  %v1526 = vmul.f32 %v1517, 1.442695
  %v1527 = vpow.pop %v1526
  %v1528 = vmul.f32 %v1518, 1.442695
  %v1529 = vpow.pop %v1528
  %v1530 = vmul.f32 %v1519, 1.442695
  %v1531 = vpow.pop %v1530
  %v1532 = vmul.f32 %v1520, 1.442695
  %v1533 = vpow.pop %v1532
  %v1534 = vmul.f32 %v1521, 1.442695
  %v1535 = vpow.pop %v1534
  %v1536 = vmul.f32 %v1522, 1.442695
  %v1537 = vpow.pop %v1536
  %v1538 = vmul.f32 %v1523, 1.442695
  %v1539 = vpow.pop %v1538
  %v1540 = vadd.f32 %v1525, %v1527
  %v1541 = vadd.f32 %v1540, %v1529
  %v1542 = vadd.f32 %v1541, %v1531
  %v1543 = vadd.f32 %v1542, %v1533
  %v1544 = vadd.f32 %v1543, %v1535
  %v1545 = vadd.f32 %v1544, %v1537
  %v1546 = vadd.f32 %v1545, %v1539
  %v1547 = vrot.slane %v1546, 4
  %v1548 = vadd.f32 %v1546, %v1547
  %v1549 = vrot.slane %v1548, 2
  %v1550 = vadd.f32 %v1548, %v1549
  %v1551 = vrot.slane %v1550, 1
  %v1552 = vadd.f32 %v1550, %v1551
  %v1553 = vlog2.pop %v1552
  %v1554 = vmul.f32 %v1553, 0.6931472
  %v1555 = vadd.f32 %v1515, %v1554
  %v1556 = vlaneseq
  %v1557 = vshrl.u32 %v1556, 7
  %v1558 = vsub.s32 0, %v1557
  %v1559 = vrot.slane %v1502, %v1558
  %vm1560 = vcmp.eq.s32.totalorder %v529, %v1559
  %vm1561 = vcmp.eq.s32.totalorder %v530, %v1559
  %vm1562 = vcmp.eq.s32.totalorder %v531, %v1559
  %vm1563 = vcmp.eq.s32.totalorder %v532, %v1559
  %vm1564 = vcmp.eq.s32.totalorder %v533, %v1559
  %vm1565 = vcmp.eq.s32.totalorder %v534, %v1559
  %vm1566 = vcmp.eq.s32.totalorder %v535, %v1559
  %vm1567 = vcmp.eq.s32.totalorder %v536, %v1559
  %v1568 = vsel %vm1560, %v1472, 0.0
  %v1569 = vsel %vm1561, %v1475, 0.0
  %v1570 = vsel %vm1562, %v1480, 0.0
  %v1571 = vsel %vm1563, %v1483, 0.0
  %v1572 = vsel %vm1564, %v1488, 0.0
  %v1573 = vsel %vm1565, %v1491, 0.0
  %v1574 = vsel %vm1566, %v1496, 0.0
  %v1575 = vsel %vm1567, %v1499, 0.0
  %v1576 = vadd.f32 %v1568, %v1569
  %v1577 = vadd.f32 %v1576, %v1570
  %v1578 = vadd.f32 %v1577, %v1571
  %v1579 = vadd.f32 %v1578, %v1572
  %v1580 = vadd.f32 %v1579, %v1573
  %v1581 = vadd.f32 %v1580, %v1574
  %v1582 = vadd.f32 %v1581, %v1575
  %v1583 = vrot.slane %v1582, 4
  %v1584 = vadd.f32 %v1582, %v1583
  %v1585 = vrot.slane %v1584, 2
  %v1586 = vadd.f32 %v1584, %v1585
  %v1587 = vrot.slane %v1586, 1
  %v1588 = vadd.f32 %v1586, %v1587
  %v1589 = vsub.f32 %v1555, %v1588
  %1590 = vst [vmem:[%s16 + $0x1] sm:$0x1] %v1589
  %vm1591 = vcmp.ge.f32.partialorder %v1472, %v1515
  %vm1592 = vcmp.ge.f32.partialorder %v1475, %v1515
  %vm1593 = vcmp.ge.f32.partialorder %v1480, %v1515
  %vm1594 = vcmp.ge.f32.partialorder %v1483, %v1515
  %vm1595 = vcmp.ge.f32.partialorder %v1488, %v1515
  %vm1596 = vcmp.ge.f32.partialorder %v1491, %v1515
  %vm1597 = vcmp.ge.f32.partialorder %v1496, %v1515
  %vm1598 = vcmp.ge.f32.partialorder %v1499, %v1515
  %v1599 = vsel %vm1591, %v529, 63
  %v1600 = vsel %vm1592, %v530, 63
  %v1601 = vsel %vm1593, %v531, 63
  %v1602 = vsel %vm1594, %v532, 63
  %v1603 = vsel %vm1595, %v533, 63
  %v1604 = vsel %vm1596, %v534, 63
  %v1605 = vsel %vm1597, %v535, 63
  %v1606 = vsel %vm1598, %v536, 63
  %vm1607 = vcmp.lt.s32.totalorder %v1599, %v1603
  %v1608 = vsel %vm1607, %v1599, %v1603
  %vm1609 = vcmp.lt.s32.totalorder %v1600, %v1604
  %v1610 = vsel %vm1609, %v1600, %v1604
  %vm1611 = vcmp.lt.s32.totalorder %v1601, %v1605
  %v1612 = vsel %vm1611, %v1601, %v1605
  %vm1613 = vcmp.lt.s32.totalorder %v1602, %v1606
  %v1614 = vsel %vm1613, %v1602, %v1606
  %vm1615 = vcmp.lt.s32.totalorder %v1608, %v1610
  %v1616 = vsel %vm1615, %v1608, %v1610
  %vm1617 = vcmp.lt.s32.totalorder %v1612, %v1614
  %v1618 = vsel %vm1617, %v1612, %v1614
  %vm1619 = vcmp.lt.s32.totalorder %v1616, %v1618
  %v1620 = vsel %vm1619, %v1616, %v1618
  %v1621 = vrot.slane %v1620, 4
  %vm1622 = vcmp.lt.s32.totalorder %v1620, %v1621
  %v1623 = vsel %vm1622, %v1620, %v1621
  %v1624 = vrot.slane %v1623, 2
  %vm1625 = vcmp.lt.s32.totalorder %v1623, %v1624
  %v1626 = vsel %vm1625, %v1623, %v1624
  %v1627 = vrot.slane %v1626, 1
  %vm1628 = vcmp.lt.s32.totalorder %v1626, %v1627
  %v1629 = vsel %vm1628, %v1626, %v1627
  %1630 = vst [vmem:[%s17 + $0x1] sm:$0x1] %v1629
  // Predicated region
  $region62: #{bestrq_forward.1} parent=0 // pred_check
    _
  $region63: #{bestrq_forward.1} parent=0 // pred_check_branch
    %1632 = sbr.rel (0) target = $region65
  $region64: #{bestrq_forward.1} parent=0 // pred_region
    _
  $region65: #{bestrq_forward.1} parent=0 // pred_fallthru
    _
  // Predicated region
  $region66: #{bestrq_forward.1} parent=0 // pred_check
    _
  $region67: #{bestrq_forward.1} parent=0 // pred_check_branch
    %1634 = sbr.rel (0) target = $region69
  $region68: #{bestrq_forward.1} parent=0 // pred_region
    _
  $region69: #{bestrq_forward.1} parent=0 // pred_fallthru
    _
  // Predicated region
  $region70: #{bestrq_forward.1} parent=0 // pred_check
    _
  $region71: #{bestrq_forward.1} parent=0 // pred_check_branch
    %1636 = sbr.rel (0) target = $region73
  $region72: #{bestrq_forward.1} parent=0 // pred_region
    _
  $region73: #{bestrq_forward.1} parent=0 // pred_fallthru
    _
  // Predicated region
  $region74: #{bestrq_forward.1} parent=0 // pred_check
    _
  $region75: #{bestrq_forward.1} parent=0 // pred_check_branch
    %1638 = sbr.rel (0) target = $region77
  $region76: #{bestrq_forward.1} parent=0 // pred_region
    _
  $region77: #{bestrq_forward.1} parent=0 // pred_fallthru
    _
  // Predicated region
  $region78: #{bestrq_forward.1} parent=0 // pred_check
    _
  $region79: #{bestrq_forward.1} parent=0 // pred_check_branch
    %1640 = sbr.rel (0) target = $region81
  $region80: #{bestrq_forward.1} parent=0 // pred_region
    _
  $region81: #{bestrq_forward.1} parent=0 // pred_fallthru
    _
  // Predicated region
  $region82: #{bestrq_forward.1} parent=0 // pred_check
    _
  $region83: #{bestrq_forward.1} parent=0 // pred_check_branch
    %1642 = sbr.rel (0) target = $region85
  $region84: #{bestrq_forward.1} parent=0 // pred_region
    _
  $region85: #{bestrq_forward.1} parent=0 // pred_fallthru
    _

</llo_original>
